<compile_context>
chip_gen: v5e
topology: v5e:2x2
jax: 0.10.0
libtpu: 0.0.40
codegen_flags: <defaults>
</compile_context>

<pallas_src>
import functools

import jax
import jax.numpy as jnp
import numpy as np
from jax import lax
from jax.experimental import pallas as pl
from jax.experimental.pallas import tpu as pltpu


# ----------------------------- Pallas kernel ------------------------------- #

def make_fused_kernel(B, T, E, H, num_layers):
    """Builds the fused embed(Linear)+ReLU+LSTM-stack kernel for static shapes."""

    def kernel(*refs):
        x_ref, w_emb_ref, b_emb_ref = refs[0], refs[1], refs[2]
        lstm_refs = refs[3:3 + 3 * num_layers]
        emb_ref = refs[3 + 3 * num_layers]
        out_ref = refs[3 + 3 * num_layers + 1]

        # ---- Embedding: one MXU matmul over all B*T rows, + bias ----
        emb = jnp.dot(x_ref[...], w_emb_ref[...],
                      preferred_element_type=jnp.float32) + b_emb_ref[...]
        emb_ref[...] = emb                        # (B*T, E), batch-major rows (b*T + t)
        # TODO(synk): nn.Dropout is identity in eval mode; training-mode dropout
        # (embedding + inter-layer LSTM dropout) is not implemented.
        act = jnp.maximum(emb, 0.0)               # ReLU, stays VMEM/vreg resident

        # One-shot rearrangement batch-major (b*T + t) -> time-major (t*B + b),
        # so every per-timestep slice below is a contiguous static slice.
        act_tm = jnp.concatenate(
            [act[bb * T + t: bb * T + t + 1, :] for t in range(T) for bb in range(B)],
            axis=0)                               # (T*B, E)

        x_tm = act_tm
        hs = None
        for li in range(num_layers):
            wih = lstm_refs[3 * li][...]          # (in_dim, 4H)
            whh = lstm_refs[3 * li + 1][...]      # (H, 4H)
            bias = lstm_refs[3 * li + 2][...]     # (1, 4H) == b_ih + b_hh folded

            # Hoisted input projection: one matmul covering every timestep.
            xw = jnp.dot(x_tm, wih, preferred_element_type=jnp.float32) + bias  # (T*B, 4H)

            h = jnp.zeros((B, H), jnp.float32)
            c = jnp.zeros((B, H), jnp.float32)
            hs = []
            for t in range(T):                    # fully unrolled (static T)
                gates = xw[t * B:(t + 1) * B, :] + jnp.dot(
                    h, whh, preferred_element_type=jnp.float32)   # (B, 4H)
                # Two full-width EUP passes, then slice (PyTorch gate order i,f,g,o).
                sig = jax.nn.sigmoid(gates)
                tnh = jnp.tanh(gates)
                i = sig[:, 0 * H:1 * H]
                f = sig[:, 1 * H:2 * H]
                g = tnh[:, 2 * H:3 * H]
                o = sig[:, 3 * H:4 * H]
                c = f * c + i * g
                h = o * jnp.tanh(c)
                hs.append(h)

            if li + 1 < num_layers:
                # Time-major hidden sequence feeds the next layer (stays in VMEM).
                # Inter-layer dropout is identity in eval mode.
                x_tm = jnp.concatenate(hs, axis=0)                # (T*B, H)

        # Lane-dense HBM output: (B, T*H); row b, cols [t*H:(t+1)*H] == h_t[b].
        out_ref[...] = jnp.concatenate(hs, axis=1)                # (B, T*H)

    return kernel


# ------------------------------ Host wrapper ------------------------------- #

_VMEM = pl.BlockSpec(memory_space=pltpu.MemorySpace.VMEM)


def sequence_encoder_lstm_forward(x, params):
    """x: (B, T, D_in) float32.  Returns (lstm_out (B,T,H), emb (B,T,E))."""
    B, T, D_in = x.shape
    E = params["w_emb"].shape[1]
    H = params["lstm"][0][1].shape[0]
    num_layers = len(params["lstm"])

    flat_lstm = [a for layer in params["lstm"] for a in layer]
    kernel = make_fused_kernel(B, T, E, H, num_layers)
    n_in = 3 + 3 * num_layers

    emb2d, out2d = pl.pallas_call(
        kernel,
        out_shape=[jax.ShapeDtypeStruct((B * T, E), jnp.float32),
                   jax.ShapeDtypeStruct((B, T * H), jnp.float32)],
        in_specs=[_VMEM] * n_in,
        out_specs=[_VMEM, _VMEM],
        # No grid: whole problem is << VMEM; a grid would only add pipeline
        # overhead.  For large B, add a batch grid + dimension_semantics=
        # ("parallel",) to shard sequences across v7x's two TensorCores.
    )(x.reshape(B * T, D_in), params["w_emb"], params["b_emb"], *flat_lstm)

    # Contiguous reshapes only (free) -- no XLA transposes / HBM round trips.
    return out2d.reshape(B, T, H), emb2d.reshape(B, T, E)


# --------------------------- Pure-JAX reference ---------------------------- #

def _ref_forward(x, params):
    B, T, _ = x.shape
    emb = x @ params["w_emb"] + params["b_emb"]
    h_in = jnp.maximum(emb, 0.0)
    for (wih, whh, b) in params["lstm"]:
        H = whh.shape[0]

        def step(carry, x_t):
            h, c = carry
            gates = x_t @ wih + h @ whh + b[0]
            i = jax.nn.sigmoid(gates[:, 0 * H:1 * H])
            f = jax.nn.sigmoid(gates[:, 1 * H:2 * H])
            g = jnp.tanh(gates[:, 2 * H:3 * H])
            o = jax.nn.sigmoid(gates[:, 3 * H:4 * H])
            c = f * c + i * g
            h = o * jnp.tanh(c)
            return (h, c), h

        h0 = jnp.zeros((B, H), jnp.float32)
        c0 = jnp.zeros((B, H), jnp.float32)
        _, hs = lax.scan(step, (h0, c0), jnp.transpose(h_in, (1, 0, 2)))
        h_in = jnp.transpose(hs, (1, 0, 2))
    return h_in, emb


# --------------------------------- Main ------------------------------------ #

def _init_params(key, d_in, e, h, layers):
    ks = jax.random.split(key, 2 + 3 * layers)
    params = {
        "w_emb": 0.1 * jax.random.normal(ks[0], (d_in, e), jnp.float32),
        "b_emb": 0.1 * jax.random.normal(ks[1], (1, e), jnp.float32),
        "lstm": [],
    }
    in_dim = e
    for l in range(layers):
        wih = 0.1 * jax.random.normal(ks[2 + 3 * l], (in_dim, 4 * h), jnp.float32)
        whh = 0.1 * jax.random.normal(ks[3 + 3 * l], (h, 4 * h), jnp.float32)
        b = 0.1 * jax.random.normal(ks[4 + 3 * l], (1, 4 * h), jnp.float32)  # b_ih + b_hh folded
        params["lstm"].append((wih, whh, b))
        in_dim = h
    return params


if __name__ == "__main__":
    B, T, D_in, E, H, LAYERS = 2, 8, 16, 32, 32, 2

    key = jax.random.PRNGKey(0)
    k_x, k_p = jax.random.split(key)
    x = jax.random.normal(k_x, (B, T, D_in), jnp.float32)
    params = _init_params(k_p, D_in, E, H, LAYERS)

    out, emb = sequence_encoder_lstm_forward(x, params)
    out = jax.block_until_ready(out)
    emb = jax.block_until_ready(emb)

    ref_out, ref_emb = _ref_forward(x, params)
    assert out.shape == (B, T, H) and emb.shape == (B, T, E)
    np.testing.assert_allclose(np.asarray(out), np.asarray(ref_out), rtol=1e-5, atol=1e-5)
    np.testing.assert_allclose(np.asarray(emb), np.asarray(ref_emb), rtol=1e-5, atol=1e-5)

    print("KERNEL_OK")
</pallas_src>

<mosaic_0001>
module attributes {stable_mosaic.version = 11 : i64} {
  func.func @kernel(%arg0: memref<16x16xf32, #tpu.memory_space<vmem>>, %arg1: memref<16x32xf32, #tpu.memory_space<vmem>>, %arg2: memref<1x32xf32, #tpu.memory_space<vmem>>, %arg3: memref<32x128xf32, #tpu.memory_space<vmem>>, %arg4: memref<32x128xf32, #tpu.memory_space<vmem>>, %arg5: memref<1x128xf32, #tpu.memory_space<vmem>>, %arg6: memref<32x128xf32, #tpu.memory_space<vmem>>, %arg7: memref<32x128xf32, #tpu.memory_space<vmem>>, %arg8: memref<1x128xf32, #tpu.memory_space<vmem>>, %arg9: memref<16x32xf32, #tpu.memory_space<vmem>>, %arg10: memref<2x256xf32, #tpu.memory_space<vmem>>) attributes {dimension_semantics = [], scalar_prefetch = 0 : i64, scratch_operands = 0 : i64, tpu.core_type = #tpu.core_type<tc>} {
    %c0 = arith.constant 0 : index
    %c0_0 = arith.constant 0 : index
    %0 = vector.load %arg0[%c0, %c0_0] : memref<16x16xf32, #tpu.memory_space<vmem>>, vector<16x16xf32>
    %c0_1 = arith.constant 0 : index
    %c0_2 = arith.constant 0 : index
    %1 = vector.load %arg1[%c0_1, %c0_2] : memref<16x32xf32, #tpu.memory_space<vmem>>, vector<16x32xf32>
    %cst = arith.constant dense<0.000000e+00> : vector<16x32xf32>
    %2 = tpu.matmul %0, %1, %cst {dimension_numbers = #tpu.dot_dimension_numbers<[1], [0], [0], [1], [0, 0, 1, 1], [], []>} : vector<16x16xf32>, vector<16x32xf32>, vector<16x32xf32> -> vector<16x32xf32>
    %c0_3 = arith.constant 0 : index
    %c0_4 = arith.constant 0 : index
    %3 = vector.load %arg2[%c0_3, %c0_4] : memref<1x32xf32, #tpu.memory_space<vmem>>, vector<1x32xf32>
    %4 = vector.broadcast %3 : vector<1x32xf32> to vector<16x32xf32>
    %5 = arith.addf %2, %4 : vector<16x32xf32>
    %c0_5 = arith.constant 0 : index
    %c0_6 = arith.constant 0 : index
    %6 = vector.load %arg9[%c0_5, %c0_6] : memref<16x32xf32, #tpu.memory_space<vmem>>, vector<16x32xf32>
    tpu.vector_store %arg9[%c0_5, %c0_6], %5 {strides = array<i32>} : memref<16x32xf32, #tpu.memory_space<vmem>>, vector<16x32xf32>,
    %cst_7 = arith.constant 0.000000e+00 : f32
    %7 = vector.broadcast %cst_7 : f32 to vector<16x32xf32>
    %8 = arith.maximumf %5, %7 : vector<16x32xf32>
    %9 = vector.extract_strided_slice %8 {offsets = [0, 0], sizes = [1, 32], strides = [1, 1]} : vector<16x32xf32> to vector<1x32xf32>
    %10 = vector.extract_strided_slice %8 {offsets = [8, 0], sizes = [1, 32], strides = [1, 1]} : vector<16x32xf32> to vector<1x32xf32>
    %11 = vector.extract_strided_slice %8 {offsets = [1, 0], sizes = [1, 32], strides = [1, 1]} : vector<16x32xf32> to vector<1x32xf32>
    %12 = vector.extract_strided_slice %8 {offsets = [9, 0], sizes = [1, 32], strides = [1, 1]} : vector<16x32xf32> to vector<1x32xf32>
    %13 = vector.extract_strided_slice %8 {offsets = [2, 0], sizes = [1, 32], strides = [1, 1]} : vector<16x32xf32> to vector<1x32xf32>
    %14 = vector.extract_strided_slice %8 {offsets = [10, 0], sizes = [1, 32], strides = [1, 1]} : vector<16x32xf32> to vector<1x32xf32>
    %15 = vector.extract_strided_slice %8 {offsets = [3, 0], sizes = [1, 32], strides = [1, 1]} : vector<16x32xf32> to vector<1x32xf32>
    %16 = vector.extract_strided_slice %8 {offsets = [11, 0], sizes = [1, 32], strides = [1, 1]} : vector<16x32xf32> to vector<1x32xf32>
    %17 = vector.extract_strided_slice %8 {offsets = [4, 0], sizes = [1, 32], strides = [1, 1]} : vector<16x32xf32> to vector<1x32xf32>
    %18 = vector.extract_strided_slice %8 {offsets = [12, 0], sizes = [1, 32], strides = [1, 1]} : vector<16x32xf32> to vector<1x32xf32>
    %19 = vector.extract_strided_slice %8 {offsets = [5, 0], sizes = [1, 32], strides = [1, 1]} : vector<16x32xf32> to vector<1x32xf32>
    %20 = vector.extract_strided_slice %8 {offsets = [13, 0], sizes = [1, 32], strides = [1, 1]} : vector<16x32xf32> to vector<1x32xf32>
    %21 = vector.extract_strided_slice %8 {offsets = [6, 0], sizes = [1, 32], strides = [1, 1]} : vector<16x32xf32> to vector<1x32xf32>
    %22 = vector.extract_strided_slice %8 {offsets = [14, 0], sizes = [1, 32], strides = [1, 1]} : vector<16x32xf32> to vector<1x32xf32>
    %23 = vector.extract_strided_slice %8 {offsets = [7, 0], sizes = [1, 32], strides = [1, 1]} : vector<16x32xf32> to vector<1x32xf32>
    %24 = vector.extract_strided_slice %8 {offsets = [15, 0], sizes = [1, 32], strides = [1, 1]} : vector<16x32xf32> to vector<1x32xf32>
    %25 = tpu.concatenate %9, %10, %11, %12, %13, %14, %15, %16, %17, %18, %19, %20, %21, %22, %23, %24 in 0 : vector<1x32xf32>, vector<1x32xf32>, vector<1x32xf32>, vector<1x32xf32>, vector<1x32xf32>, vector<1x32xf32>, vector<1x32xf32>, vector<1x32xf32>, vector<1x32xf32>, vector<1x32xf32>, vector<1x32xf32>, vector<1x32xf32>, vector<1x32xf32>, vector<1x32xf32>, vector<1x32xf32>, vector<1x32xf32> -> vector<16x32xf32>
    %c0_8 = arith.constant 0 : index
    %c0_9 = arith.constant 0 : index
    %26 = vector.load %arg3[%c0_8, %c0_9] : memref<32x128xf32, #tpu.memory_space<vmem>>, vector<32x128xf32>
    %c0_10 = arith.constant 0 : index
    %c0_11 = arith.constant 0 : index
    %27 = vector.load %arg4[%c0_10, %c0_11] : memref<32x128xf32, #tpu.memory_space<vmem>>, vector<32x128xf32>
    %c0_12 = arith.constant 0 : index
    %c0_13 = arith.constant 0 : index
    %28 = vector.load %arg5[%c0_12, %c0_13] : memref<1x128xf32, #tpu.memory_space<vmem>>, vector<1x128xf32>
    %cst_14 = arith.constant dense<0.000000e+00> : vector<16x128xf32>
    %29 = tpu.matmul %25, %26, %cst_14 {dimension_numbers = #tpu.dot_dimension_numbers<[1], [0], [0], [1], [0, 0, 1, 1], [], []>} : vector<16x32xf32>, vector<32x128xf32>, vector<16x128xf32> -> vector<16x128xf32>
    %30 = vector.broadcast %28 : vector<1x128xf32> to vector<16x128xf32>
    %31 = arith.addf %29, %30 : vector<16x128xf32>
    %cst_15 = arith.constant 0.000000e+00 : f32
    %32 = vector.broadcast %cst_15 : f32 to vector<2x32xf32>
    %cst_16 = arith.constant 0.000000e+00 : f32
    %33 = vector.broadcast %cst_16 : f32 to vector<2x32xf32>
    %34 = vector.extract_strided_slice %31 {offsets = [0, 0], sizes = [2, 128], strides = [1, 1]} : vector<16x128xf32> to vector<2x128xf32>
    %cst_17 = arith.constant dense<0.000000e+00> : vector<2x128xf32>
    %35 = tpu.matmul %32, %27, %cst_17 {dimension_numbers = #tpu.dot_dimension_numbers<[1], [0], [0], [1], [0, 0, 1, 1], [], []>} : vector<2x32xf32>, vector<32x128xf32>, vector<2x128xf32> -> vector<2x128xf32>
    %36 = arith.addf %34, %35 : vector<2x128xf32>
    %37 = arith.negf %36 : vector<2x128xf32>
    %38 = math.exp %37 : vector<2x128xf32>
    %cst_18 = arith.constant 1.000000e+00 : f32
    %39 = vector.broadcast %cst_18 : f32 to vector<2x128xf32>
    %40 = arith.addf %39, %38 : vector<2x128xf32>
    %41 = arith.divf %39, %40 : vector<2x128xf32>
    %42 = math.tanh %36 : vector<2x128xf32>
    %43 = vector.extract_strided_slice %41 {offsets = [0, 0], sizes = [2, 32], strides = [1, 1]} : vector<2x128xf32> to vector<2x32xf32>
    %44 = vector.extract_strided_slice %41 {offsets = [0, 32], sizes = [2, 32], strides = [1, 1]} : vector<2x128xf32> to vector<2x32xf32>
    %45 = vector.extract_strided_slice %42 {offsets = [0, 64], sizes = [2, 32], strides = [1, 1]} : vector<2x128xf32> to vector<2x32xf32>
    %46 = vector.extract_strided_slice %41 {offsets = [0, 96], sizes = [2, 32], strides = [1, 1]} : vector<2x128xf32> to vector<2x32xf32>
    %47 = arith.mulf %44, %33 : vector<2x32xf32>
    %48 = arith.mulf %43, %45 : vector<2x32xf32>
    %49 = arith.addf %47, %48 : vector<2x32xf32>
    %50 = math.tanh %49 : vector<2x32xf32>
    %51 = arith.mulf %46, %50 : vector<2x32xf32>
    %52 = vector.extract_strided_slice %31 {offsets = [2, 0], sizes = [2, 128], strides = [1, 1]} : vector<16x128xf32> to vector<2x128xf32>
    %cst_19 = arith.constant dense<0.000000e+00> : vector<2x128xf32>
    %53 = tpu.matmul %51, %27, %cst_19 {dimension_numbers = #tpu.dot_dimension_numbers<[1], [0], [0], [1], [0, 0, 1, 1], [], []>} : vector<2x32xf32>, vector<32x128xf32>, vector<2x128xf32> -> vector<2x128xf32>
    %54 = arith.addf %52, %53 : vector<2x128xf32>
    %55 = arith.negf %54 : vector<2x128xf32>
    %56 = math.exp %55 : vector<2x128xf32>
    %cst_20 = arith.constant 1.000000e+00 : f32
    %57 = vector.broadcast %cst_20 : f32 to vector<2x128xf32>
    %58 = arith.addf %57, %56 : vector<2x128xf32>
    %59 = arith.divf %57, %58 : vector<2x128xf32>
    %60 = math.tanh %54 : vector<2x128xf32>
    %61 = vector.extract_strided_slice %59 {offsets = [0, 0], sizes = [2, 32], strides = [1, 1]} : vector<2x128xf32> to vector<2x32xf32>
    %62 = vector.extract_strided_slice %59 {offsets = [0, 32], sizes = [2, 32], strides = [1, 1]} : vector<2x128xf32> to vector<2x32xf32>
    %63 = vector.extract_strided_slice %60 {offsets = [0, 64], sizes = [2, 32], strides = [1, 1]} : vector<2x128xf32> to vector<2x32xf32>
    %64 = vector.extract_strided_slice %59 {offsets = [0, 96], sizes = [2, 32], strides = [1, 1]} : vector<2x128xf32> to vector<2x32xf32>
    %65 = arith.mulf %62, %49 : vector<2x32xf32>
    %66 = arith.mulf %61, %63 : vector<2x32xf32>
    %67 = arith.addf %65, %66 : vector<2x32xf32>
    %68 = math.tanh %67 : vector<2x32xf32>
    %69 = arith.mulf %64, %68 : vector<2x32xf32>
    %70 = vector.extract_strided_slice %31 {offsets = [4, 0], sizes = [2, 128], strides = [1, 1]} : vector<16x128xf32> to vector<2x128xf32>
    %cst_21 = arith.constant dense<0.000000e+00> : vector<2x128xf32>
    %71 = tpu.matmul %69, %27, %cst_21 {dimension_numbers = #tpu.dot_dimension_numbers<[1], [0], [0], [1], [0, 0, 1, 1], [], []>} : vector<2x32xf32>, vector<32x128xf32>, vector<2x128xf32> -> vector<2x128xf32>
    %72 = arith.addf %70, %71 : vector<2x128xf32>
    %73 = arith.negf %72 : vector<2x128xf32>
    %74 = math.exp %73 : vector<2x128xf32>
    %cst_22 = arith.constant 1.000000e+00 : f32
    %75 = vector.broadcast %cst_22 : f32 to vector<2x128xf32>
    %76 = arith.addf %75, %74 : vector<2x128xf32>
    %77 = arith.divf %75, %76 : vector<2x128xf32>
    %78 = math.tanh %72 : vector<2x128xf32>
    %79 = vector.extract_strided_slice %77 {offsets = [0, 0], sizes = [2, 32], strides = [1, 1]} : vector<2x128xf32> to vector<2x32xf32>
    %80 = vector.extract_strided_slice %77 {offsets = [0, 32], sizes = [2, 32], strides = [1, 1]} : vector<2x128xf32> to vector<2x32xf32>
    %81 = vector.extract_strided_slice %78 {offsets = [0, 64], sizes = [2, 32], strides = [1, 1]} : vector<2x128xf32> to vector<2x32xf32>
    %82 = vector.extract_strided_slice %77 {offsets = [0, 96], sizes = [2, 32], strides = [1, 1]} : vector<2x128xf32> to vector<2x32xf32>
    %83 = arith.mulf %80, %67 : vector<2x32xf32>
    %84 = arith.mulf %79, %81 : vector<2x32xf32>
    %85 = arith.addf %83, %84 : vector<2x32xf32>
    %86 = math.tanh %85 : vector<2x32xf32>
    %87 = arith.mulf %82, %86 : vector<2x32xf32>
    %88 = vector.extract_strided_slice %31 {offsets = [6, 0], sizes = [2, 128], strides = [1, 1]} : vector<16x128xf32> to vector<2x128xf32>
    %cst_23 = arith.constant dense<0.000000e+00> : vector<2x128xf32>
    %89 = tpu.matmul %87, %27, %cst_23 {dimension_numbers = #tpu.dot_dimension_numbers<[1], [0], [0], [1], [0, 0, 1, 1], [], []>} : vector<2x32xf32>, vector<32x128xf32>, vector<2x128xf32> -> vector<2x128xf32>
    %90 = arith.addf %88, %89 : vector<2x128xf32>
    %91 = arith.negf %90 : vector<2x128xf32>
    %92 = math.exp %91 : vector<2x128xf32>
    %cst_24 = arith.constant 1.000000e+00 : f32
    %93 = vector.broadcast %cst_24 : f32 to vector<2x128xf32>
    %94 = arith.addf %93, %92 : vector<2x128xf32>
    %95 = arith.divf %93, %94 : vector<2x128xf32>
    %96 = math.tanh %90 : vector<2x128xf32>
    %97 = vector.extract_strided_slice %95 {offsets = [0, 0], sizes = [2, 32], strides = [1, 1]} : vector<2x128xf32> to vector<2x32xf32>
    %98 = vector.extract_strided_slice %95 {offsets = [0, 32], sizes = [2, 32], strides = [1, 1]} : vector<2x128xf32> to vector<2x32xf32>
    %99 = vector.extract_strided_slice %96 {offsets = [0, 64], sizes = [2, 32], strides = [1, 1]} : vector<2x128xf32> to vector<2x32xf32>
    %100 = vector.extract_strided_slice %95 {offsets = [0, 96], sizes = [2, 32], strides = [1, 1]} : vector<2x128xf32> to vector<2x32xf32>
    %101 = arith.mulf %98, %85 : vector<2x32xf32>
    %102 = arith.mulf %97, %99 : vector<2x32xf32>
    %103 = arith.addf %101, %102 : vector<2x32xf32>
    %104 = math.tanh %103 : vector<2x32xf32>
    %105 = arith.mulf %100, %104 : vector<2x32xf32>
    %106 = vector.extract_strided_slice %31 {offsets = [8, 0], sizes = [2, 128], strides = [1, 1]} : vector<16x128xf32> to vector<2x128xf32>
    %cst_25 = arith.constant dense<0.000000e+00> : vector<2x128xf32>
    %107 = tpu.matmul %105, %27, %cst_25 {dimension_numbers = #tpu.dot_dimension_numbers<[1], [0], [0], [1], [0, 0, 1, 1], [], []>} : vector<2x32xf32>, vector<32x128xf32>, vector<2x128xf32> -> vector<2x128xf32>
    %108 = arith.addf %106, %107 : vector<2x128xf32>
    %109 = arith.negf %108 : vector<2x128xf32>
    %110 = math.exp %109 : vector<2x128xf32>
    %cst_26 = arith.constant 1.000000e+00 : f32
    %111 = vector.broadcast %cst_26 : f32 to vector<2x128xf32>
    %112 = arith.addf %111, %110 : vector<2x128xf32>
    %113 = arith.divf %111, %112 : vector<2x128xf32>
    %114 = math.tanh %108 : vector<2x128xf32>
    %115 = vector.extract_strided_slice %113 {offsets = [0, 0], sizes = [2, 32], strides = [1, 1]} : vector<2x128xf32> to vector<2x32xf32>
    %116 = vector.extract_strided_slice %113 {offsets = [0, 32], sizes = [2, 32], strides = [1, 1]} : vector<2x128xf32> to vector<2x32xf32>
    %117 = vector.extract_strided_slice %114 {offsets = [0, 64], sizes = [2, 32], strides = [1, 1]} : vector<2x128xf32> to vector<2x32xf32>
    %118 = vector.extract_strided_slice %113 {offsets = [0, 96], sizes = [2, 32], strides = [1, 1]} : vector<2x128xf32> to vector<2x32xf32>
    %119 = arith.mulf %116, %103 : vector<2x32xf32>
    %120 = arith.mulf %115, %117 : vector<2x32xf32>
    %121 = arith.addf %119, %120 : vector<2x32xf32>
    %122 = math.tanh %121 : vector<2x32xf32>
    %123 = arith.mulf %118, %122 : vector<2x32xf32>
    %124 = vector.extract_strided_slice %31 {offsets = [10, 0], sizes = [2, 128], strides = [1, 1]} : vector<16x128xf32> to vector<2x128xf32>
    %cst_27 = arith.constant dense<0.000000e+00> : vector<2x128xf32>
    %125 = tpu.matmul %123, %27, %cst_27 {dimension_numbers = #tpu.dot_dimension_numbers<[1], [0], [0], [1], [0, 0, 1, 1], [], []>} : vector<2x32xf32>, vector<32x128xf32>, vector<2x128xf32> -> vector<2x128xf32>
    %126 = arith.addf %124, %125 : vector<2x128xf32>
    %127 = arith.negf %126 : vector<2x128xf32>
    %128 = math.exp %127 : vector<2x128xf32>
    %cst_28 = arith.constant 1.000000e+00 : f32
    %129 = vector.broadcast %cst_28 : f32 to vector<2x128xf32>
    %130 = arith.addf %129, %128 : vector<2x128xf32>
    %131 = arith.divf %129, %130 : vector<2x128xf32>
    %132 = math.tanh %126 : vector<2x128xf32>
    %133 = vector.extract_strided_slice %131 {offsets = [0, 0], sizes = [2, 32], strides = [1, 1]} : vector<2x128xf32> to vector<2x32xf32>
    %134 = vector.extract_strided_slice %131 {offsets = [0, 32], sizes = [2, 32], strides = [1, 1]} : vector<2x128xf32> to vector<2x32xf32>
    %135 = vector.extract_strided_slice %132 {offsets = [0, 64], sizes = [2, 32], strides = [1, 1]} : vector<2x128xf32> to vector<2x32xf32>
    %136 = vector.extract_strided_slice %131 {offsets = [0, 96], sizes = [2, 32], strides = [1, 1]} : vector<2x128xf32> to vector<2x32xf32>
    %137 = arith.mulf %134, %121 : vector<2x32xf32>
    %138 = arith.mulf %133, %135 : vector<2x32xf32>
    %139 = arith.addf %137, %138 : vector<2x32xf32>
    %140 = math.tanh %139 : vector<2x32xf32>
    %141 = arith.mulf %136, %140 : vector<2x32xf32>
    %142 = vector.extract_strided_slice %31 {offsets = [12, 0], sizes = [2, 128], strides = [1, 1]} : vector<16x128xf32> to vector<2x128xf32>
    %cst_29 = arith.constant dense<0.000000e+00> : vector<2x128xf32>
    %143 = tpu.matmul %141, %27, %cst_29 {dimension_numbers = #tpu.dot_dimension_numbers<[1], [0], [0], [1], [0, 0, 1, 1], [], []>} : vector<2x32xf32>, vector<32x128xf32>, vector<2x128xf32> -> vector<2x128xf32>
    %144 = arith.addf %142, %143 : vector<2x128xf32>
    %145 = arith.negf %144 : vector<2x128xf32>
    %146 = math.exp %145 : vector<2x128xf32>
    %cst_30 = arith.constant 1.000000e+00 : f32
    %147 = vector.broadcast %cst_30 : f32 to vector<2x128xf32>
    %148 = arith.addf %147, %146 : vector<2x128xf32>
    %149 = arith.divf %147, %148 : vector<2x128xf32>
    %150 = math.tanh %144 : vector<2x128xf32>
    %151 = vector.extract_strided_slice %149 {offsets = [0, 0], sizes = [2, 32], strides = [1, 1]} : vector<2x128xf32> to vector<2x32xf32>
    %152 = vector.extract_strided_slice %149 {offsets = [0, 32], sizes = [2, 32], strides = [1, 1]} : vector<2x128xf32> to vector<2x32xf32>
    %153 = vector.extract_strided_slice %150 {offsets = [0, 64], sizes = [2, 32], strides = [1, 1]} : vector<2x128xf32> to vector<2x32xf32>
    %154 = vector.extract_strided_slice %149 {offsets = [0, 96], sizes = [2, 32], strides = [1, 1]} : vector<2x128xf32> to vector<2x32xf32>
    %155 = arith.mulf %152, %139 : vector<2x32xf32>
    %156 = arith.mulf %151, %153 : vector<2x32xf32>
    %157 = arith.addf %155, %156 : vector<2x32xf32>
    %158 = math.tanh %157 : vector<2x32xf32>
    %159 = arith.mulf %154, %158 : vector<2x32xf32>
    %160 = vector.extract_strided_slice %31 {offsets = [14, 0], sizes = [2, 128], strides = [1, 1]} : vector<16x128xf32> to vector<2x128xf32>
    %cst_31 = arith.constant dense<0.000000e+00> : vector<2x128xf32>
    %161 = tpu.matmul %159, %27, %cst_31 {dimension_numbers = #tpu.dot_dimension_numbers<[1], [0], [0], [1], [0, 0, 1, 1], [], []>} : vector<2x32xf32>, vector<32x128xf32>, vector<2x128xf32> -> vector<2x128xf32>
    %162 = arith.addf %160, %161 : vector<2x128xf32>
    %163 = arith.negf %162 : vector<2x128xf32>
    %164 = math.exp %163 : vector<2x128xf32>
    %cst_32 = arith.constant 1.000000e+00 : f32
    %165 = vector.broadcast %cst_32 : f32 to vector<2x128xf32>
    %166 = arith.addf %165, %164 : vector<2x128xf32>
    %167 = arith.divf %165, %166 : vector<2x128xf32>
    %168 = math.tanh %162 : vector<2x128xf32>
    %169 = vector.extract_strided_slice %167 {offsets = [0, 0], sizes = [2, 32], strides = [1, 1]} : vector<2x128xf32> to vector<2x32xf32>
    %170 = vector.extract_strided_slice %167 {offsets = [0, 32], sizes = [2, 32], strides = [1, 1]} : vector<2x128xf32> to vector<2x32xf32>
    %171 = vector.extract_strided_slice %168 {offsets = [0, 64], sizes = [2, 32], strides = [1, 1]} : vector<2x128xf32> to vector<2x32xf32>
    %172 = vector.extract_strided_slice %167 {offsets = [0, 96], sizes = [2, 32], strides = [1, 1]} : vector<2x128xf32> to vector<2x32xf32>
    %173 = arith.mulf %170, %157 : vector<2x32xf32>
    %174 = arith.mulf %169, %171 : vector<2x32xf32>
    %175 = arith.addf %173, %174 : vector<2x32xf32>
    %176 = math.tanh %175 : vector<2x32xf32>
    %177 = arith.mulf %172, %176 : vector<2x32xf32>
    %178 = tpu.concatenate %51, %69, %87, %105, %123, %141, %159, %177 in 0 : vector<2x32xf32>, vector<2x32xf32>, vector<2x32xf32>, vector<2x32xf32>, vector<2x32xf32>, vector<2x32xf32>, vector<2x32xf32>, vector<2x32xf32> -> vector<16x32xf32>
    %c0_33 = arith.constant 0 : index
    %c0_34 = arith.constant 0 : index
    %179 = vector.load %arg6[%c0_33, %c0_34] : memref<32x128xf32, #tpu.memory_space<vmem>>, vector<32x128xf32>
    %c0_35 = arith.constant 0 : index
    %c0_36 = arith.constant 0 : index
    %180 = vector.load %arg7[%c0_35, %c0_36] : memref<32x128xf32, #tpu.memory_space<vmem>>, vector<32x128xf32>
    %c0_37 = arith.constant 0 : index
    %c0_38 = arith.constant 0 : index
    %181 = vector.load %arg8[%c0_37, %c0_38] : memref<1x128xf32, #tpu.memory_space<vmem>>, vector<1x128xf32>
    %cst_39 = arith.constant dense<0.000000e+00> : vector<16x128xf32>
    %182 = tpu.matmul %178, %179, %cst_39 {dimension_numbers = #tpu.dot_dimension_numbers<[1], [0], [0], [1], [0, 0, 1, 1], [], []>} : vector<16x32xf32>, vector<32x128xf32>, vector<16x128xf32> -> vector<16x128xf32>
    %183 = vector.broadcast %181 : vector<1x128xf32> to vector<16x128xf32>
    %184 = arith.addf %182, %183 : vector<16x128xf32>
    %cst_40 = arith.constant 0.000000e+00 : f32
    %185 = vector.broadcast %cst_40 : f32 to vector<2x32xf32>
    %cst_41 = arith.constant 0.000000e+00 : f32
    %186 = vector.broadcast %cst_41 : f32 to vector<2x32xf32>
    %187 = vector.extract_strided_slice %184 {offsets = [0, 0], sizes = [2, 128], strides = [1, 1]} : vector<16x128xf32> to vector<2x128xf32>
    %cst_42 = arith.constant dense<0.000000e+00> : vector<2x128xf32>
    %188 = tpu.matmul %185, %180, %cst_42 {dimension_numbers = #tpu.dot_dimension_numbers<[1], [0], [0], [1], [0, 0, 1, 1], [], []>} : vector<2x32xf32>, vector<32x128xf32>, vector<2x128xf32> -> vector<2x128xf32>
    %189 = arith.addf %187, %188 : vector<2x128xf32>
    %190 = arith.negf %189 : vector<2x128xf32>
    %191 = math.exp %190 : vector<2x128xf32>
    %cst_43 = arith.constant 1.000000e+00 : f32
    %192 = vector.broadcast %cst_43 : f32 to vector<2x128xf32>
    %193 = arith.addf %192, %191 : vector<2x128xf32>
    %194 = arith.divf %192, %193 : vector<2x128xf32>
    %195 = math.tanh %189 : vector<2x128xf32>
    %196 = vector.extract_strided_slice %194 {offsets = [0, 0], sizes = [2, 32], strides = [1, 1]} : vector<2x128xf32> to vector<2x32xf32>
    %197 = vector.extract_strided_slice %194 {offsets = [0, 32], sizes = [2, 32], strides = [1, 1]} : vector<2x128xf32> to vector<2x32xf32>
    %198 = vector.extract_strided_slice %195 {offsets = [0, 64], sizes = [2, 32], strides = [1, 1]} : vector<2x128xf32> to vector<2x32xf32>
    %199 = vector.extract_strided_slice %194 {offsets = [0, 96], sizes = [2, 32], strides = [1, 1]} : vector<2x128xf32> to vector<2x32xf32>
    %200 = arith.mulf %197, %186 : vector<2x32xf32>
    %201 = arith.mulf %196, %198 : vector<2x32xf32>
    %202 = arith.addf %200, %201 : vector<2x32xf32>
    %203 = math.tanh %202 : vector<2x32xf32>
    %204 = arith.mulf %199, %203 : vector<2x32xf32>
    %205 = vector.extract_strided_slice %184 {offsets = [2, 0], sizes = [2, 128], strides = [1, 1]} : vector<16x128xf32> to vector<2x128xf32>
    %cst_44 = arith.constant dense<0.000000e+00> : vector<2x128xf32>
    %206 = tpu.matmul %204, %180, %cst_44 {dimension_numbers = #tpu.dot_dimension_numbers<[1], [0], [0], [1], [0, 0, 1, 1], [], []>} : vector<2x32xf32>, vector<32x128xf32>, vector<2x128xf32> -> vector<2x128xf32>
    %207 = arith.addf %205, %206 : vector<2x128xf32>
    %208 = arith.negf %207 : vector<2x128xf32>
    %209 = math.exp %208 : vector<2x128xf32>
    %cst_45 = arith.constant 1.000000e+00 : f32
    %210 = vector.broadcast %cst_45 : f32 to vector<2x128xf32>
    %211 = arith.addf %210, %209 : vector<2x128xf32>
    %212 = arith.divf %210, %211 : vector<2x128xf32>
    %213 = math.tanh %207 : vector<2x128xf32>
    %214 = vector.extract_strided_slice %212 {offsets = [0, 0], sizes = [2, 32], strides = [1, 1]} : vector<2x128xf32> to vector<2x32xf32>
    %215 = vector.extract_strided_slice %212 {offsets = [0, 32], sizes = [2, 32], strides = [1, 1]} : vector<2x128xf32> to vector<2x32xf32>
    %216 = vector.extract_strided_slice %213 {offsets = [0, 64], sizes = [2, 32], strides = [1, 1]} : vector<2x128xf32> to vector<2x32xf32>
    %217 = vector.extract_strided_slice %212 {offsets = [0, 96], sizes = [2, 32], strides = [1, 1]} : vector<2x128xf32> to vector<2x32xf32>
    %218 = arith.mulf %215, %202 : vector<2x32xf32>
    %219 = arith.mulf %214, %216 : vector<2x32xf32>
    %220 = arith.addf %218, %219 : vector<2x32xf32>
    %221 = math.tanh %220 : vector<2x32xf32>
    %222 = arith.mulf %217, %221 : vector<2x32xf32>
    %223 = vector.extract_strided_slice %184 {offsets = [4, 0], sizes = [2, 128], strides = [1, 1]} : vector<16x128xf32> to vector<2x128xf32>
    %cst_46 = arith.constant dense<0.000000e+00> : vector<2x128xf32>
    %224 = tpu.matmul %222, %180, %cst_46 {dimension_numbers = #tpu.dot_dimension_numbers<[1], [0], [0], [1], [0, 0, 1, 1], [], []>} : vector<2x32xf32>, vector<32x128xf32>, vector<2x128xf32> -> vector<2x128xf32>
    %225 = arith.addf %223, %224 : vector<2x128xf32>
    %226 = arith.negf %225 : vector<2x128xf32>
    %227 = math.exp %226 : vector<2x128xf32>
    %cst_47 = arith.constant 1.000000e+00 : f32
    %228 = vector.broadcast %cst_47 : f32 to vector<2x128xf32>
    %229 = arith.addf %228, %227 : vector<2x128xf32>
    %230 = arith.divf %228, %229 : vector<2x128xf32>
    %231 = math.tanh %225 : vector<2x128xf32>
    %232 = vector.extract_strided_slice %230 {offsets = [0, 0], sizes = [2, 32], strides = [1, 1]} : vector<2x128xf32> to vector<2x32xf32>
    %233 = vector.extract_strided_slice %230 {offsets = [0, 32], sizes = [2, 32], strides = [1, 1]} : vector<2x128xf32> to vector<2x32xf32>
    %234 = vector.extract_strided_slice %231 {offsets = [0, 64], sizes = [2, 32], strides = [1, 1]} : vector<2x128xf32> to vector<2x32xf32>
    %235 = vector.extract_strided_slice %230 {offsets = [0, 96], sizes = [2, 32], strides = [1, 1]} : vector<2x128xf32> to vector<2x32xf32>
    %236 = arith.mulf %233, %220 : vector<2x32xf32>
    %237 = arith.mulf %232, %234 : vector<2x32xf32>
    %238 = arith.addf %236, %237 : vector<2x32xf32>
    %239 = math.tanh %238 : vector<2x32xf32>
    %240 = arith.mulf %235, %239 : vector<2x32xf32>
    %241 = vector.extract_strided_slice %184 {offsets = [6, 0], sizes = [2, 128], strides = [1, 1]} : vector<16x128xf32> to vector<2x128xf32>
    %cst_48 = arith.constant dense<0.000000e+00> : vector<2x128xf32>
    %242 = tpu.matmul %240, %180, %cst_48 {dimension_numbers = #tpu.dot_dimension_numbers<[1], [0], [0], [1], [0, 0, 1, 1], [], []>} : vector<2x32xf32>, vector<32x128xf32>, vector<2x128xf32> -> vector<2x128xf32>
    %243 = arith.addf %241, %242 : vector<2x128xf32>
    %244 = arith.negf %243 : vector<2x128xf32>
    %245 = math.exp %244 : vector<2x128xf32>
    %cst_49 = arith.constant 1.000000e+00 : f32
    %246 = vector.broadcast %cst_49 : f32 to vector<2x128xf32>
    %247 = arith.addf %246, %245 : vector<2x128xf32>
    %248 = arith.divf %246, %247 : vector<2x128xf32>
    %249 = math.tanh %243 : vector<2x128xf32>
    %250 = vector.extract_strided_slice %248 {offsets = [0, 0], sizes = [2, 32], strides = [1, 1]} : vector<2x128xf32> to vector<2x32xf32>
    %251 = vector.extract_strided_slice %248 {offsets = [0, 32], sizes = [2, 32], strides = [1, 1]} : vector<2x128xf32> to vector<2x32xf32>
    %252 = vector.extract_strided_slice %249 {offsets = [0, 64], sizes = [2, 32], strides = [1, 1]} : vector<2x128xf32> to vector<2x32xf32>
    %253 = vector.extract_strided_slice %248 {offsets = [0, 96], sizes = [2, 32], strides = [1, 1]} : vector<2x128xf32> to vector<2x32xf32>
    %254 = arith.mulf %251, %238 : vector<2x32xf32>
    %255 = arith.mulf %250, %252 : vector<2x32xf32>
    %256 = arith.addf %254, %255 : vector<2x32xf32>
    %257 = math.tanh %256 : vector<2x32xf32>
    %258 = arith.mulf %253, %257 : vector<2x32xf32>
    %259 = vector.extract_strided_slice %184 {offsets = [8, 0], sizes = [2, 128], strides = [1, 1]} : vector<16x128xf32> to vector<2x128xf32>
    %cst_50 = arith.constant dense<0.000000e+00> : vector<2x128xf32>
    %260 = tpu.matmul %258, %180, %cst_50 {dimension_numbers = #tpu.dot_dimension_numbers<[1], [0], [0], [1], [0, 0, 1, 1], [], []>} : vector<2x32xf32>, vector<32x128xf32>, vector<2x128xf32> -> vector<2x128xf32>
    %261 = arith.addf %259, %260 : vector<2x128xf32>
    %262 = arith.negf %261 : vector<2x128xf32>
    %263 = math.exp %262 : vector<2x128xf32>
    %cst_51 = arith.constant 1.000000e+00 : f32
    %264 = vector.broadcast %cst_51 : f32 to vector<2x128xf32>
    %265 = arith.addf %264, %263 : vector<2x128xf32>
    %266 = arith.divf %264, %265 : vector<2x128xf32>
    %267 = math.tanh %261 : vector<2x128xf32>
    %268 = vector.extract_strided_slice %266 {offsets = [0, 0], sizes = [2, 32], strides = [1, 1]} : vector<2x128xf32> to vector<2x32xf32>
    %269 = vector.extract_strided_slice %266 {offsets = [0, 32], sizes = [2, 32], strides = [1, 1]} : vector<2x128xf32> to vector<2x32xf32>
    %270 = vector.extract_strided_slice %267 {offsets = [0, 64], sizes = [2, 32], strides = [1, 1]} : vector<2x128xf32> to vector<2x32xf32>
    %271 = vector.extract_strided_slice %266 {offsets = [0, 96], sizes = [2, 32], strides = [1, 1]} : vector<2x128xf32> to vector<2x32xf32>
    %272 = arith.mulf %269, %256 : vector<2x32xf32>
    %273 = arith.mulf %268, %270 : vector<2x32xf32>
    %274 = arith.addf %272, %273 : vector<2x32xf32>
    %275 = math.tanh %274 : vector<2x32xf32>
    %276 = arith.mulf %271, %275 : vector<2x32xf32>
    %277 = vector.extract_strided_slice %184 {offsets = [10, 0], sizes = [2, 128], strides = [1, 1]} : vector<16x128xf32> to vector<2x128xf32>
    %cst_52 = arith.constant dense<0.000000e+00> : vector<2x128xf32>
    %278 = tpu.matmul %276, %180, %cst_52 {dimension_numbers = #tpu.dot_dimension_numbers<[1], [0], [0], [1], [0, 0, 1, 1], [], []>} : vector<2x32xf32>, vector<32x128xf32>, vector<2x128xf32> -> vector<2x128xf32>
    %279 = arith.addf %277, %278 : vector<2x128xf32>
    %280 = arith.negf %279 : vector<2x128xf32>
    %281 = math.exp %280 : vector<2x128xf32>
    %cst_53 = arith.constant 1.000000e+00 : f32
    %282 = vector.broadcast %cst_53 : f32 to vector<2x128xf32>
    %283 = arith.addf %282, %281 : vector<2x128xf32>
    %284 = arith.divf %282, %283 : vector<2x128xf32>
    %285 = math.tanh %279 : vector<2x128xf32>
    %286 = vector.extract_strided_slice %284 {offsets = [0, 0], sizes = [2, 32], strides = [1, 1]} : vector<2x128xf32> to vector<2x32xf32>
    %287 = vector.extract_strided_slice %284 {offsets = [0, 32], sizes = [2, 32], strides = [1, 1]} : vector<2x128xf32> to vector<2x32xf32>
    %288 = vector.extract_strided_slice %285 {offsets = [0, 64], sizes = [2, 32], strides = [1, 1]} : vector<2x128xf32> to vector<2x32xf32>
    %289 = vector.extract_strided_slice %284 {offsets = [0, 96], sizes = [2, 32], strides = [1, 1]} : vector<2x128xf32> to vector<2x32xf32>
    %290 = arith.mulf %287, %274 : vector<2x32xf32>
    %291 = arith.mulf %286, %288 : vector<2x32xf32>
    %292 = arith.addf %290, %291 : vector<2x32xf32>
    %293 = math.tanh %292 : vector<2x32xf32>
    %294 = arith.mulf %289, %293 : vector<2x32xf32>
    %295 = vector.extract_strided_slice %184 {offsets = [12, 0], sizes = [2, 128], strides = [1, 1]} : vector<16x128xf32> to vector<2x128xf32>
    %cst_54 = arith.constant dense<0.000000e+00> : vector<2x128xf32>
    %296 = tpu.matmul %294, %180, %cst_54 {dimension_numbers = #tpu.dot_dimension_numbers<[1], [0], [0], [1], [0, 0, 1, 1], [], []>} : vector<2x32xf32>, vector<32x128xf32>, vector<2x128xf32> -> vector<2x128xf32>
    %297 = arith.addf %295, %296 : vector<2x128xf32>
    %298 = arith.negf %297 : vector<2x128xf32>
    %299 = math.exp %298 : vector<2x128xf32>
    %cst_55 = arith.constant 1.000000e+00 : f32
    %300 = vector.broadcast %cst_55 : f32 to vector<2x128xf32>
    %301 = arith.addf %300, %299 : vector<2x128xf32>
    %302 = arith.divf %300, %301 : vector<2x128xf32>
    %303 = math.tanh %297 : vector<2x128xf32>
    %304 = vector.extract_strided_slice %302 {offsets = [0, 0], sizes = [2, 32], strides = [1, 1]} : vector<2x128xf32> to vector<2x32xf32>
    %305 = vector.extract_strided_slice %302 {offsets = [0, 32], sizes = [2, 32], strides = [1, 1]} : vector<2x128xf32> to vector<2x32xf32>
    %306 = vector.extract_strided_slice %303 {offsets = [0, 64], sizes = [2, 32], strides = [1, 1]} : vector<2x128xf32> to vector<2x32xf32>
    %307 = vector.extract_strided_slice %302 {offsets = [0, 96], sizes = [2, 32], strides = [1, 1]} : vector<2x128xf32> to vector<2x32xf32>
    %308 = arith.mulf %305, %292 : vector<2x32xf32>
    %309 = arith.mulf %304, %306 : vector<2x32xf32>
    %310 = arith.addf %308, %309 : vector<2x32xf32>
    %311 = math.tanh %310 : vector<2x32xf32>
    %312 = arith.mulf %307, %311 : vector<2x32xf32>
    %313 = vector.extract_strided_slice %184 {offsets = [14, 0], sizes = [2, 128], strides = [1, 1]} : vector<16x128xf32> to vector<2x128xf32>
    %cst_56 = arith.constant dense<0.000000e+00> : vector<2x128xf32>
    %314 = tpu.matmul %312, %180, %cst_56 {dimension_numbers = #tpu.dot_dimension_numbers<[1], [0], [0], [1], [0, 0, 1, 1], [], []>} : vector<2x32xf32>, vector<32x128xf32>, vector<2x128xf32> -> vector<2x128xf32>
    %315 = arith.addf %313, %314 : vector<2x128xf32>
    %316 = arith.negf %315 : vector<2x128xf32>
    %317 = math.exp %316 : vector<2x128xf32>
    %cst_57 = arith.constant 1.000000e+00 : f32
    %318 = vector.broadcast %cst_57 : f32 to vector<2x128xf32>
    %319 = arith.addf %318, %317 : vector<2x128xf32>
    %320 = arith.divf %318, %319 : vector<2x128xf32>
    %321 = math.tanh %315 : vector<2x128xf32>
    %322 = vector.extract_strided_slice %320 {offsets = [0, 0], sizes = [2, 32], strides = [1, 1]} : vector<2x128xf32> to vector<2x32xf32>
    %323 = vector.extract_strided_slice %320 {offsets = [0, 32], sizes = [2, 32], strides = [1, 1]} : vector<2x128xf32> to vector<2x32xf32>
    %324 = vector.extract_strided_slice %321 {offsets = [0, 64], sizes = [2, 32], strides = [1, 1]} : vector<2x128xf32> to vector<2x32xf32>
    %325 = vector.extract_strided_slice %320 {offsets = [0, 96], sizes = [2, 32], strides = [1, 1]} : vector<2x128xf32> to vector<2x32xf32>
    %326 = arith.mulf %323, %310 : vector<2x32xf32>
    %327 = arith.mulf %322, %324 : vector<2x32xf32>
    %328 = arith.addf %326, %327 : vector<2x32xf32>
    %329 = math.tanh %328 : vector<2x32xf32>
    %330 = arith.mulf %325, %329 : vector<2x32xf32>
    %331 = tpu.concatenate %204, %222, %240, %258, %276, %294, %312, %330 in 1 : vector<2x32xf32>, vector<2x32xf32>, vector<2x32xf32>, vector<2x32xf32>, vector<2x32xf32>, vector<2x32xf32>, vector<2x32xf32>, vector<2x32xf32> -> vector<2x256xf32>
    %c0_58 = arith.constant 0 : index
    %c0_59 = arith.constant 0 : index
    %332 = vector.load %arg10[%c0_58, %c0_59] : memref<2x256xf32, #tpu.memory_space<vmem>>, vector<2x256xf32>
    tpu.vector_store %arg10[%c0_58, %c0_59], %331 {strides = array<i32>} : memref<2x256xf32, #tpu.memory_space<vmem>>, vector<2x256xf32>,
    return
  }
}

</mosaic_0001>

<llo_original>
// kernel: tpu_custom_call.1
$region0: #{tpu_custom_call.1}
  #allocation0 [shape = 'u32[]', space=smem, size = 0x4, offset = 0x4, fixed_abs, tag = 'smem constant byte address 0x4 - core index']
  #allocation1 [shape = 'u32[72,128]{1,0:T(1,128)}', space=vmem, size = 0x9000, scoped, tag = 'internal scratch']
  %s0 = inlined_call_operand.hbm [shape: f32[16,16], index: 0, kind: input, shape index: {}]
  %s1 = inlined_call_operand.hbm [shape: f32[16,32], index: 1, kind: input, shape index: {}]
  %s2 = inlined_call_operand.vmem [shape: f32[1,32], index: 2, kind: input, shape index: {}]
  %s3 = inlined_call_operand.hbm [shape: f32[32,128], index: 3, kind: input, shape index: {}]
  %s4 = inlined_call_operand.hbm [shape: f32[32,128], index: 4, kind: input, shape index: {}]
  %s5 = inlined_call_operand.vmem [shape: f32[1,128], index: 5, kind: input, shape index: {}]
  %s6 = inlined_call_operand.hbm [shape: f32[32,128], index: 6, kind: input, shape index: {}]
  %s7 = inlined_call_operand.hbm [shape: f32[32,128], index: 7, kind: input, shape index: {}]
  %s8 = inlined_call_operand.vmem [shape: f32[1,128], index: 8, kind: input, shape index: {}]
  %s9 = inlined_call_operand.hbm [shape: f32[16,32], index: 9, kind: output, shape index: {0}]
  %s10 = inlined_call_operand.hbm [shape: f32[2,256], index: 10, kind: output, shape index: {1}]
  %11 = xla_tuple %s9, %s10
  %s12 = sld [smem:[#allocation0]]
  $region78: #{tpu_custom_call.1} parent=0
    _
  %s14 = ssub.s32 1, %s12
  %s15 = scalar_select 0, %s14, %s12
  $region1: #{tpu_custom_call.1} parent=0
    #allocation2 [shape = 'u8[8192]{0}', space=vmem, size = 0x2000, scoped, tag = 'input window, operand 0, single buffered']
    #allocation3 [shape = 's32[1]{0}', space=sflag, size = 0x4, scoped, tag = 'scoped memory for tpu_custom_call.1']
    #allocation4 [shape = 's32[1]{0}', space=sflag, size = 0x4, scoped, tag = 'scoped memory for tpu_custom_call.1']
    #allocation5 [shape = 'u8[8192]{0}', space=vmem, size = 0x2000, scoped, tag = 'input window, operand 1, single buffered']
    #allocation6 [shape = 's32[1]{0}', space=sflag, size = 0x4, scoped, tag = 'scoped memory for tpu_custom_call.1']
    #allocation7 [shape = 'u8[16384]{0}', space=vmem, size = 0x4000, scoped, tag = 'input window, operand 3, single buffered']
    #allocation8 [shape = 'u8[16384]{0}', space=vmem, size = 0x4000, scoped, tag = 'input window, operand 4, single buffered']
    #allocation9 [shape = 's32[1]{0}', space=sflag, size = 0x4, scoped, tag = 'scoped memory for tpu_custom_call.1']
    #allocation10 [shape = 'u8[16384]{0}', space=vmem, size = 0x4000, scoped, tag = 'input window, operand 6, single buffered']
    #allocation11 [shape = 'u8[16384]{0}', space=vmem, size = 0x4000, scoped, tag = 'input window, operand 7, single buffered']
    #allocation12 [shape = 's32[1]{0}', space=sflag, size = 0x4, scoped, tag = 'scoped memory for tpu_custom_call.1']
    #allocation13 [shape = 'u8[8192]{0}', space=vmem, size = 0x2000, scoped, tag = 'output window, operand 0, single buffered']
    #allocation14 [shape = 'u8[2048]{0}', space=vmem, size = 0x800, scoped, tag = 'output window, operand 1, single buffered']
    #allocation15 [shape = 's32[1]{0}', space=sflag, size = 0x4, scoped, tag = 'scoped memory for tpu_custom_call.1']
    %16 = vsyncpa [#allocation3], 0
    %17 = vsyncpa [#allocation6], 0
    %18 = vsyncpa [#allocation9], 0
    %19 = vsyncpa [#allocation12], 0
    %20 = vsyncpa [#allocation4], 0
    %21 = vsyncpa [#allocation15], 0
    // Predicated region
    $region2: #{tpu_custom_call.1} parent=1 // pred_check
      _
    $region3: #{tpu_custom_call.1} parent=1 // pred_check_branch
      %23 = sbr.rel (0) target = $region5
    $region4: #{tpu_custom_call.1} parent=1 // pred_region
      %25 = vsyncadd [#allocation3], 0
      %s26 = sshll.u32 %s0, 4
      %s27 = int_to_ptr.hbm [resolvable:$true] %s26
      %s28 = sshll.u32 [#allocation2], 4
      %s29 = int_to_ptr.vmem [resolvable:$true] %s28
      %34 = dma.hbm_to_vmem [thread:$0]  %s27, 256, %s29, [#allocation3], 128, 128, 8
    $region5: #{tpu_custom_call.1} parent=1 // pred_fallthru
      _
    // Predicated region
    $region6: #{tpu_custom_call.1} parent=1 // pred_check
      _
    $region7: #{tpu_custom_call.1} parent=1 // pred_check_branch
      %36 = sbr.rel (0) target = $region9
    $region8: #{tpu_custom_call.1} parent=1 // pred_region
      %38 = vsyncadd [#allocation6], 0
      %s39 = sshll.u32 %s1, 4
      %s40 = int_to_ptr.hbm [resolvable:$true] %s39
      %s41 = sshll.u32 [#allocation5], 4
      %s42 = int_to_ptr.vmem [resolvable:$true] %s41
      %47 = dma.hbm_to_vmem [thread:$0]  %s40, 256, %s42, [#allocation6], 128, 128, 8
    $region9: #{tpu_custom_call.1} parent=1 // pred_fallthru
      _
    // Predicated region
    $region10: #{tpu_custom_call.1} parent=1 // pred_check
      _
    $region11: #{tpu_custom_call.1} parent=1 // pred_check_branch
      %49 = sbr.rel (0) target = $region13
    $region12: #{tpu_custom_call.1} parent=1 // pred_region
      _
    $region13: #{tpu_custom_call.1} parent=1 // pred_fallthru
      _
    // Predicated region
    $region14: #{tpu_custom_call.1} parent=1 // pred_check
      _
    $region15: #{tpu_custom_call.1} parent=1 // pred_check_branch
      %51 = sbr.rel (0) target = $region17
    $region16: #{tpu_custom_call.1} parent=1 // pred_region
      %53 = vsyncadd [#allocation6], 0
      %s54 = sshll.u32 %s3, 4
      %s55 = int_to_ptr.hbm [resolvable:$true] %s54
      %s56 = sshll.u32 [#allocation7], 4
      %s57 = int_to_ptr.vmem [resolvable:$true] %s56
      %62 = dma.hbm_to_vmem [thread:$0]  %s55, 512, %s57, [#allocation6], 128, 128, 8
    $region17: #{tpu_custom_call.1} parent=1 // pred_fallthru
      _
    // Predicated region
    $region18: #{tpu_custom_call.1} parent=1 // pred_check
      _
    $region19: #{tpu_custom_call.1} parent=1 // pred_check_branch
      %64 = sbr.rel (0) target = $region21
    $region20: #{tpu_custom_call.1} parent=1 // pred_region
      %66 = vsyncadd [#allocation9], 0
      %s67 = sshll.u32 %s4, 4
      %s68 = int_to_ptr.hbm [resolvable:$true] %s67
      %s69 = sshll.u32 [#allocation8], 4
      %s70 = int_to_ptr.vmem [resolvable:$true] %s69
      %75 = dma.hbm_to_vmem [thread:$0]  %s68, 512, %s70, [#allocation9], 128, 128, 8
    $region21: #{tpu_custom_call.1} parent=1 // pred_fallthru
      _
    // Predicated region
    $region22: #{tpu_custom_call.1} parent=1 // pred_check
      _
    $region23: #{tpu_custom_call.1} parent=1 // pred_check_branch
      %77 = sbr.rel (0) target = $region25
    $region24: #{tpu_custom_call.1} parent=1 // pred_region
      _
    $region25: #{tpu_custom_call.1} parent=1 // pred_fallthru
      _
    // Predicated region
    $region26: #{tpu_custom_call.1} parent=1 // pred_check
      _
    $region27: #{tpu_custom_call.1} parent=1 // pred_check_branch
      %79 = sbr.rel (0) target = $region29
    $region28: #{tpu_custom_call.1} parent=1 // pred_region
      %81 = vsyncadd [#allocation9], 0
      %s82 = sshll.u32 %s6, 4
      %s83 = int_to_ptr.hbm [resolvable:$true] %s82
      %s84 = sshll.u32 [#allocation10], 4
      %s85 = int_to_ptr.vmem [resolvable:$true] %s84
      %90 = dma.hbm_to_vmem [thread:$0]  %s83, 512, %s85, [#allocation9], 128, 128, 8
    $region29: #{tpu_custom_call.1} parent=1 // pred_fallthru
      _
    // Predicated region
    $region30: #{tpu_custom_call.1} parent=1 // pred_check
      _
    $region31: #{tpu_custom_call.1} parent=1 // pred_check_branch
      %92 = sbr.rel (0) target = $region33
    $region32: #{tpu_custom_call.1} parent=1 // pred_region
      %94 = vsyncadd [#allocation12], 0
      %s95 = sshll.u32 %s7, 4
      %s96 = int_to_ptr.hbm [resolvable:$true] %s95
      %s97 = sshll.u32 [#allocation11], 4
      %s98 = int_to_ptr.vmem [resolvable:$true] %s97
      %103 = dma.hbm_to_vmem [thread:$0]  %s96, 512, %s98, [#allocation12], 128, 128, 8
    $region33: #{tpu_custom_call.1} parent=1 // pred_fallthru
      _
    // Predicated region
    $region34: #{tpu_custom_call.1} parent=1 // pred_check
      _
    $region35: #{tpu_custom_call.1} parent=1 // pred_check_branch
      %105 = sbr.rel (0) target = $region37
    $region36: #{tpu_custom_call.1} parent=1 // pred_region
      _
    $region37: #{tpu_custom_call.1} parent=1 // pred_fallthru
      _
    // Predicated region
    $region38: #{tpu_custom_call.1} parent=1 // pred_check
      _
    $region39: #{tpu_custom_call.1} parent=1 // pred_check_branch
      %107 = sbr.rel (0) target = $region41
    $region40: #{tpu_custom_call.1} parent=1 // pred_region
      %109 = dma.done [#allocation3], 256
    $region41: #{tpu_custom_call.1} parent=1 // pred_fallthru
      _
    // Predicated region
    $region42: #{tpu_custom_call.1} parent=1 // pred_check
      _
    $region43: #{tpu_custom_call.1} parent=1 // pred_check_branch
      %111 = sbr.rel (0) target = $region45
    $region44: #{tpu_custom_call.1} parent=1 // pred_region
      %113 = dma.done [#allocation6], 256
    $region45: #{tpu_custom_call.1} parent=1 // pred_fallthru
      _
    // Predicated region
    $region46: #{tpu_custom_call.1} parent=1 // pred_check
      _
    $region47: #{tpu_custom_call.1} parent=1 // pred_check_branch
      %115 = sbr.rel (0) target = $region49
    $region48: #{tpu_custom_call.1} parent=1 // pred_region
      %117 = dma.done [#allocation6], 512
    $region49: #{tpu_custom_call.1} parent=1 // pred_fallthru
      _
    // Predicated region
    $region50: #{tpu_custom_call.1} parent=1 // pred_check
      _
    $region51: #{tpu_custom_call.1} parent=1 // pred_check_branch
      %119 = sbr.rel (0) target = $region53
    $region52: #{tpu_custom_call.1} parent=1 // pred_region
      %121 = dma.done [#allocation9], 512
    $region53: #{tpu_custom_call.1} parent=1 // pred_fallthru
      _
    // Predicated region
    $region54: #{tpu_custom_call.1} parent=1 // pred_check
      _
    $region55: #{tpu_custom_call.1} parent=1 // pred_check_branch
      %123 = sbr.rel (0) target = $region57
    $region56: #{tpu_custom_call.1} parent=1 // pred_region
      %125 = dma.done [#allocation9], 512
    $region57: #{tpu_custom_call.1} parent=1 // pred_fallthru
      _
    // Predicated region
    $region58: #{tpu_custom_call.1} parent=1 // pred_check
      _
    $region59: #{tpu_custom_call.1} parent=1 // pred_check_branch
      %127 = sbr.rel (0) target = $region61
    $region60: #{tpu_custom_call.1} parent=1 // pred_region
      %129 = dma.done [#allocation12], 512
    $region61: #{tpu_custom_call.1} parent=1 // pred_fallthru
      _
    %v130 = vld [vmem:[#allocation2] sm:$0xff]
    %v131 = vld [vmem:[#allocation2 + $0x8] sm:$0xff]
    %v132 = vld [vmem:[#allocation5] sm:$0xff]
    %v133 = vld [vmem:[#allocation5 + $0x8] sm:$0xff]
    %v134 = vld [vmem:[%s2] sm:$0x1]
    %v136 = vperm.slane %v134, 0
    %vm138 = vcmask 130048
    %v140 = vsel %vm138, %v130, 0
    %v143 = vsel %vm138, %v131, 0
    %145 = vmatpush.msra.mxu0 0.0
    %146 = vmatpush.msra.mxu0 0.0
    %147 = vmatpush.msra.mxu0 0.0
    %148 = vmatpush.msra.mxu0 0.0
    %149 = vmatpush.msra.mxu0 0.0
    %150 = vmatpush.msra.mxu0 0.0
    %151 = vmatpush.msra.mxu0 0.0
    %152 = vmatpush.msra.mxu0 0.0
    %153 = vmatpush.msra.mxu0 0.0
    %154 = vmatpush.msra.mxu0 0.0
    %155 = vmatpush.msra.mxu0 0.0
    %156 = vmatpush.msra.mxu0 0.0
    %157 = vmatpush.msra.mxu0 0.0
    %158 = vmatpush.msra.mxu0 0.0
    %159 = vmatpush.msra.mxu0 %v133
    %160 = vmatpush.msra.mxu0 %v132
    %161 = vmatmul.f32.gmra.mxu0 %v140
    %v162 = vpop.f32.mrf.mxu0
    %v163 = vadd.f32 %v136, %v162
    %164 = vmatmul.f32.gmra.mxu0 %v143
    %v165 = vpop.f32.mrf.mxu0
    %v166 = vadd.f32 %v136, %v165
    %167 = vdwg.mxu0
    %vm168 = vcmask 261120
    %169 = vst.msk [vmem:[#allocation13] sm:$0xff] %vm168, %v163
    %170 = vst.msk [vmem:[#allocation13 + $0x8] sm:$0xff] %vm168, %v166
    %v171 = vmax.f32 %v163, 0.0
    %v172 = vmax.f32 %v166, 0.0
    %v174 = vrot.slane %v172, 7
    %v177 = vrot.slane %v171, 7
    %v179 = vrot.slane %v172, 6
    %v181 = vrot.slane %v171, 6
    %v183 = vrot.slane %v172, 5
    %v185 = vrot.slane %v171, 5
    %v187 = vrot.slane %v172, 4
    %v189 = vrot.slane %v171, 4
    %v191 = vrot.slane %v172, 3
    %v193 = vrot.slane %v171, 3
    %v195 = vrot.slane %v172, 2
    %v197 = vrot.slane %v171, 2
    %v199 = vrot.slane %v172, 1
    %v201 = vrot.slane %v171, 1
    %vm203 = vcmask 1040384
    %v204 = vsel %vm203, %v171, %v174
    %vm205 = vcmask 1041408
    %v206 = vsel %vm205, %v204, %v177
    %vm207 = vcmask 1042432
    %v208 = vsel %vm207, %v206, %v179
    %vm209 = vcmask 1043456
    %v210 = vsel %vm209, %v208, %v181
    %vm211 = vcmask 1044480
    %v212 = vsel %vm211, %v210, %v183
    %vm213 = vcmask 1045504
    %v214 = vsel %vm213, %v212, %v185
    %vm215 = vcmask 1046528
    %v216 = vsel %vm215, %v214, %v187
    %v217 = vsel %vm203, %v189, %v191
    %v218 = vsel %vm205, %v217, %v193
    %v219 = vsel %vm207, %v218, %v195
    %v220 = vsel %vm209, %v219, %v197
    %v221 = vsel %vm211, %v220, %v199
    %v222 = vsel %vm213, %v221, %v201
    %v223 = vsel %vm215, %v222, %v172
    %v224 = vld [vmem:[#allocation7] sm:$0xff]
    %v225 = vld [vmem:[#allocation7 + $0x8] sm:$0xff]
    %v226 = vld [vmem:[#allocation7 + $0x10] sm:$0xff]
    %v227 = vld [vmem:[#allocation7 + $0x18] sm:$0xff]
    %v228 = vld [vmem:[#allocation8] sm:$0xff]
    %v229 = vld [vmem:[#allocation8 + $0x8] sm:$0xff]
    %v230 = vld [vmem:[#allocation8 + $0x10] sm:$0xff]
    %v231 = vld [vmem:[#allocation8 + $0x18] sm:$0xff]
    %v232 = vld [vmem:[%s5] sm:$0x1]
    %v234 = vperm.slane %v232, 0
    %v237 = vsel %vm168, %v216, 0
    %v240 = vsel %vm168, %v223, 0
    %242 = vmatpush.msra.mxu0 0.0
    %243 = vmatpush.msra.mxu0 0.0
    %244 = vmatpush.msra.mxu0 0.0
    %245 = vmatpush.msra.mxu0 0.0
    %246 = vmatpush.msra.mxu0 0.0
    %247 = vmatpush.msra.mxu0 0.0
    %248 = vmatpush.msra.mxu0 0.0
    %249 = vmatpush.msra.mxu0 0.0
    %250 = vmatpush.msra.mxu0 0.0
    %251 = vmatpush.msra.mxu0 0.0
    %252 = vmatpush.msra.mxu0 0.0
    %253 = vmatpush.msra.mxu0 0.0
    %254 = vmatpush.msra.mxu0 %v227
    %255 = vmatpush.msra.mxu0 %v226
    %256 = vmatpush.msra.mxu0 %v225
    %257 = vmatpush.msra.mxu0 %v224
    %258 = vmatmul.f32.gmra.mxu0 %v237
    %v259 = vpop.f32.mrf.mxu0
    %v260 = vadd.f32 %v234, %v259
    %261 = vmatmul.f32.gmra.mxu0 %v240
    %v262 = vpop.f32.mrf.mxu0
    %v263 = vadd.f32 %v234, %v262
    %264 = vdwg.mxu0
    %v266 = vsel %vm168, 0.0, 0
    %268 = vmatpush.msra.mxu0 0.0
    %269 = vmatpush.msra.mxu0 0.0
    %270 = vmatpush.msra.mxu0 0.0
    %271 = vmatpush.msra.mxu0 0.0
    %272 = vmatpush.msra.mxu0 0.0
    %273 = vmatpush.msra.mxu0 0.0
    %274 = vmatpush.msra.mxu0 0.0
    %275 = vmatpush.msra.mxu0 0.0
    %276 = vmatpush.msra.mxu0 0.0
    %277 = vmatpush.msra.mxu0 0.0
    %278 = vmatpush.msra.mxu0 0.0
    %279 = vmatpush.msra.mxu0 0.0
    %280 = vmatpush.msra.mxu0 %v231
    %281 = vmatpush.msra.mxu0 %v230
    %282 = vmatpush.msra.mxu0 %v229
    %283 = vmatpush.msra.mxu0 %v228
    %284 = vmatmul.f32.gmra.mxu0 %v266
    %v285 = vpop.f32.mrf.mxu0
    %v286 = vadd.f32 0.0, %v285
    %287 = vdwg.mxu0
    %v288 = vadd.f32 %v260, %v286
    %v289 = vxor.u32 %v288, 2147483648
    %v290 = vmul.f32 %v289, 1.442695
    %v291 = vpow.pop %v290
    %v292 = vadd.f32 %v291, 1.0
    %v293 = vrcp.pop %v292
    %v294 = vmul.f32 %v292, %v293
    %v295 = vsub.f32 1.0, %v294
    %v296 = vmul.f32 %v293, %v295
    %v297 = vadd.f32 %v293, %v296
    %vm298 = vweird.f32 %v292
    %vm299 = vweird.f32 %v293
    %vm300 = vmor %vm298, %vm299
    %v301 = vsel %vm300, %v293, %v297
    %v302 = vand.u32 2147483647, %v292
    %vm303 = vcmp.eq.f32.partialorder %v302, 8.507059e+37
    %v304 = vand.u32 %v292, 2147483648
    %v305 = vor.u32 1.1754944e-38, %v304
    %v306 = vsel %vm303, %v305, %v301
    %v307 = vmul.f32 1.0, %v306
    %v308 = vtanh.pop %v288
    %v309 = vmul.f32 %v307, 0.0
    %311 = vrot.lane.b32.xlu0 %v308, 64
    %v312 = vpop.permute.xlu0 %311
    %v314 = vmul.f32 %v307, %v312
    %316 = vrot.lane.b32.xlu0 %v314, 32
    %v317 = vpop.permute.xlu0 %316
    %v319 = vadd.f32 %v309, %v317
    %v320 = vtanh.pop %v319
    %322 = vrot.lane.b32.xlu0 %v320, 64
    %v323 = vpop.permute.xlu0 %322
    %v325 = vmul.f32 %v307, %v323
    %327 = vrot.lane.b32.xlu0 %v325, 32
    %v328 = vpop.permute.xlu0 %327
    %v329 = vsel %vm168, %v328, 0
    %331 = vmatpush.msra.mxu0 0.0
    %332 = vmatpush.msra.mxu0 0.0
    %333 = vmatpush.msra.mxu0 0.0
    %334 = vmatpush.msra.mxu0 0.0
    %335 = vmatpush.msra.mxu0 0.0
    %336 = vmatpush.msra.mxu0 0.0
    %337 = vmatpush.msra.mxu0 0.0
    %338 = vmatpush.msra.mxu0 0.0
    %339 = vmatpush.msra.mxu0 0.0
    %340 = vmatpush.msra.mxu0 0.0
    %341 = vmatpush.msra.mxu0 0.0
    %342 = vmatpush.msra.mxu0 0.0
    %343 = vmatpush.msra.mxu0 %v231
    %344 = vmatpush.msra.mxu0 %v230
    %345 = vmatpush.msra.mxu0 %v229
    %346 = vmatpush.msra.mxu0 %v228
    %347 = vmatmul.f32.gmra.mxu0 %v329
    %v348 = vpop.f32.mrf.mxu0
    %v349 = vadd.f32 0.0, %v348
    %350 = vdwg.mxu0
    %v352 = vrot.slane %v349, 6
    %v354 = vadd.f32 %v260, %v352
    %v355 = vxor.u32 %v354, 2147483648
    %v356 = vmul.f32 %v355, 1.442695
    %v357 = vpow.pop %v356
    %v358 = vadd.f32 %v357, 1.0
    %v359 = vrcp.pop %v358
    %v360 = vmul.f32 %v358, %v359
    %v361 = vsub.f32 1.0, %v360
    %v362 = vmul.f32 %v359, %v361
    %v363 = vadd.f32 %v359, %v362
    %vm364 = vweird.f32 %v358
    %vm365 = vweird.f32 %v359
    %vm366 = vmor %vm364, %vm365
    %v367 = vsel %vm366, %v359, %v363
    %v368 = vand.u32 2147483647, %v358
    %vm369 = vcmp.eq.f32.partialorder %v368, 8.507059e+37
    %v370 = vand.u32 %v358, 2147483648
    %v371 = vor.u32 1.1754944e-38, %v370
    %v372 = vsel %vm369, %v371, %v367
    %v373 = vmul.f32 1.0, %v372
    %v374 = vtanh.pop %v354
    %v376 = vrot.slane %v319, 6
    %v378 = vmul.f32 %v373, %v376
    %380 = vrot.lane.b32.xlu0 %v374, 64
    %v381 = vpop.permute.xlu0 %380
    %v383 = vmul.f32 %v373, %v381
    %385 = vrot.lane.b32.xlu0 %v383, 32
    %v386 = vpop.permute.xlu0 %385
    %v388 = vadd.f32 %v378, %v386
    %v389 = vtanh.pop %v388
    %391 = vrot.lane.b32.xlu0 %v389, 64
    %v392 = vpop.permute.xlu0 %391
    %v394 = vmul.f32 %v373, %v392
    %v396 = vrot.slane %v394, 2
    %397 = vrot.lane.b32.xlu0 %v396, 32
    %v398 = vpop.permute.xlu0 %397
    %v399 = vsel %vm168, %v398, 0
    %401 = vmatpush.msra.mxu0 0.0
    %402 = vmatpush.msra.mxu0 0.0
    %403 = vmatpush.msra.mxu0 0.0
    %404 = vmatpush.msra.mxu0 0.0
    %405 = vmatpush.msra.mxu0 0.0
    %406 = vmatpush.msra.mxu0 0.0
    %407 = vmatpush.msra.mxu0 0.0
    %408 = vmatpush.msra.mxu0 0.0
    %409 = vmatpush.msra.mxu0 0.0
    %410 = vmatpush.msra.mxu0 0.0
    %411 = vmatpush.msra.mxu0 0.0
    %412 = vmatpush.msra.mxu0 0.0
    %413 = vmatpush.msra.mxu0 %v231
    %414 = vmatpush.msra.mxu0 %v230
    %415 = vmatpush.msra.mxu0 %v229
    %416 = vmatpush.msra.mxu0 %v228
    %417 = vmatmul.f32.gmra.mxu0 %v399
    %v418 = vpop.f32.mrf.mxu0
    %v419 = vadd.f32 0.0, %v418
    %420 = vdwg.mxu0
    %v422 = vrot.slane %v419, 4
    %v424 = vadd.f32 %v260, %v422
    %v425 = vxor.u32 %v424, 2147483648
    %v426 = vmul.f32 %v425, 1.442695
    %v427 = vpow.pop %v426
    %v428 = vadd.f32 %v427, 1.0
    %v429 = vrcp.pop %v428
    %v430 = vmul.f32 %v428, %v429
    %v431 = vsub.f32 1.0, %v430
    %v432 = vmul.f32 %v429, %v431
    %v433 = vadd.f32 %v429, %v432
    %vm434 = vweird.f32 %v428
    %vm435 = vweird.f32 %v429
    %vm436 = vmor %vm434, %vm435
    %v437 = vsel %vm436, %v429, %v433
    %v438 = vand.u32 2147483647, %v428
    %vm439 = vcmp.eq.f32.partialorder %v438, 8.507059e+37
    %v440 = vand.u32 %v428, 2147483648
    %v441 = vor.u32 1.1754944e-38, %v440
    %v442 = vsel %vm439, %v441, %v437
    %v443 = vmul.f32 1.0, %v442
    %v444 = vtanh.pop %v424
    %v446 = vrot.slane %v388, 6
    %v448 = vmul.f32 %v443, %v446
    %450 = vrot.lane.b32.xlu0 %v444, 64
    %v451 = vpop.permute.xlu0 %450
    %v453 = vmul.f32 %v443, %v451
    %455 = vrot.lane.b32.xlu0 %v453, 32
    %v456 = vpop.permute.xlu0 %455
    %v458 = vadd.f32 %v448, %v456
    %v459 = vtanh.pop %v458
    %461 = vrot.lane.b32.xlu0 %v459, 64
    %v462 = vpop.permute.xlu0 %461
    %v464 = vmul.f32 %v443, %v462
    %v466 = vrot.slane %v464, 4
    %467 = vrot.lane.b32.xlu0 %v466, 32
    %v468 = vpop.permute.xlu0 %467
    %v469 = vsel %vm168, %v468, 0
    %471 = vmatpush.msra.mxu0 0.0
    %472 = vmatpush.msra.mxu0 0.0
    %473 = vmatpush.msra.mxu0 0.0
    %474 = vmatpush.msra.mxu0 0.0
    %475 = vmatpush.msra.mxu0 0.0
    %476 = vmatpush.msra.mxu0 0.0
    %477 = vmatpush.msra.mxu0 0.0
    %478 = vmatpush.msra.mxu0 0.0
    %479 = vmatpush.msra.mxu0 0.0
    %480 = vmatpush.msra.mxu0 0.0
    %481 = vmatpush.msra.mxu0 0.0
    %482 = vmatpush.msra.mxu0 0.0
    %483 = vmatpush.msra.mxu0 %v231
    %484 = vmatpush.msra.mxu0 %v230
    %485 = vmatpush.msra.mxu0 %v229
    %486 = vmatpush.msra.mxu0 %v228
    %487 = vmatmul.f32.gmra.mxu0 %v469
    %v488 = vpop.f32.mrf.mxu0
    %v489 = vadd.f32 0.0, %v488
    %490 = vdwg.mxu0
    %v492 = vrot.slane %v489, 2
    %v494 = vadd.f32 %v260, %v492
    %v495 = vxor.u32 %v494, 2147483648
    %v496 = vmul.f32 %v495, 1.442695
    %v497 = vpow.pop %v496
    %v498 = vadd.f32 %v497, 1.0
    %v499 = vrcp.pop %v498
    %v500 = vmul.f32 %v498, %v499
    %v501 = vsub.f32 1.0, %v500
    %v502 = vmul.f32 %v499, %v501
    %v503 = vadd.f32 %v499, %v502
    %vm504 = vweird.f32 %v498
    %vm505 = vweird.f32 %v499
    %vm506 = vmor %vm504, %vm505
    %v507 = vsel %vm506, %v499, %v503
    %v508 = vand.u32 2147483647, %v498
    %vm509 = vcmp.eq.f32.partialorder %v508, 8.507059e+37
    %v510 = vand.u32 %v498, 2147483648
    %v511 = vor.u32 1.1754944e-38, %v510
    %v512 = vsel %vm509, %v511, %v507
    %v513 = vmul.f32 1.0, %v512
    %v514 = vtanh.pop %v494
    %v516 = vrot.slane %v458, 6
    %v518 = vmul.f32 %v513, %v516
    %520 = vrot.lane.b32.xlu0 %v514, 64
    %v521 = vpop.permute.xlu0 %520
    %v523 = vmul.f32 %v513, %v521
    %525 = vrot.lane.b32.xlu0 %v523, 32
    %v526 = vpop.permute.xlu0 %525
    %v528 = vadd.f32 %v518, %v526
    %v529 = vtanh.pop %v528
    %531 = vrot.lane.b32.xlu0 %v529, 64
    %v532 = vpop.permute.xlu0 %531
    %v534 = vmul.f32 %v513, %v532
    %v536 = vrot.slane %v534, 6
    %537 = vrot.lane.b32.xlu0 %v536, 32
    %v538 = vpop.permute.xlu0 %537
    %v539 = vsel %vm168, %v538, 0
    %541 = vmatpush.msra.mxu0 0.0
    %542 = vmatpush.msra.mxu0 0.0
    %543 = vmatpush.msra.mxu0 0.0
    %544 = vmatpush.msra.mxu0 0.0
    %545 = vmatpush.msra.mxu0 0.0
    %546 = vmatpush.msra.mxu0 0.0
    %547 = vmatpush.msra.mxu0 0.0
    %548 = vmatpush.msra.mxu0 0.0
    %549 = vmatpush.msra.mxu0 0.0
    %550 = vmatpush.msra.mxu0 0.0
    %551 = vmatpush.msra.mxu0 0.0
    %552 = vmatpush.msra.mxu0 0.0
    %553 = vmatpush.msra.mxu0 %v231
    %554 = vmatpush.msra.mxu0 %v230
    %555 = vmatpush.msra.mxu0 %v229
    %556 = vmatpush.msra.mxu0 %v228
    %557 = vmatmul.f32.gmra.mxu0 %v539
    %v558 = vpop.f32.mrf.mxu0
    %v559 = vadd.f32 0.0, %v558
    %560 = vdwg.mxu0
    %v561 = vadd.f32 %v263, %v559
    %v562 = vxor.u32 %v561, 2147483648
    %v563 = vmul.f32 %v562, 1.442695
    %v564 = vpow.pop %v563
    %v565 = vadd.f32 %v564, 1.0
    %v566 = vrcp.pop %v565
    %v567 = vmul.f32 %v565, %v566
    %v568 = vsub.f32 1.0, %v567
    %v569 = vmul.f32 %v566, %v568
    %v570 = vadd.f32 %v566, %v569
    %vm571 = vweird.f32 %v565
    %vm572 = vweird.f32 %v566
    %vm573 = vmor %vm571, %vm572
    %v574 = vsel %vm573, %v566, %v570
    %v575 = vand.u32 2147483647, %v565
    %vm576 = vcmp.eq.f32.partialorder %v575, 8.507059e+37
    %v577 = vand.u32 %v565, 2147483648
    %v578 = vor.u32 1.1754944e-38, %v577
    %v579 = vsel %vm576, %v578, %v574
    %v580 = vmul.f32 1.0, %v579
    %v581 = vtanh.pop %v561
    %v583 = vrot.slane %v528, 6
    %v585 = vmul.f32 %v580, %v583
    %587 = vrot.lane.b32.xlu0 %v581, 64
    %v588 = vpop.permute.xlu0 %587
    %v590 = vmul.f32 %v580, %v588
    %592 = vrot.lane.b32.xlu0 %v590, 32
    %v593 = vpop.permute.xlu0 %592
    %v595 = vadd.f32 %v585, %v593
    %v596 = vtanh.pop %v595
    %598 = vrot.lane.b32.xlu0 %v596, 64
    %v599 = vpop.permute.xlu0 %598
    %v601 = vmul.f32 %v580, %v599
    %603 = vrot.lane.b32.xlu0 %v601, 32
    %v604 = vpop.permute.xlu0 %603
    %v605 = vsel %vm168, %v604, 0
    %607 = vmatpush.msra.mxu0 0.0
    %608 = vmatpush.msra.mxu0 0.0
    %609 = vmatpush.msra.mxu0 0.0
    %610 = vmatpush.msra.mxu0 0.0
    %611 = vmatpush.msra.mxu0 0.0
    %612 = vmatpush.msra.mxu0 0.0
    %613 = vmatpush.msra.mxu0 0.0
    %614 = vmatpush.msra.mxu0 0.0
    %615 = vmatpush.msra.mxu0 0.0
    %616 = vmatpush.msra.mxu0 0.0
    %617 = vmatpush.msra.mxu0 0.0
    %618 = vmatpush.msra.mxu0 0.0
    %619 = vmatpush.msra.mxu0 %v231
    %620 = vmatpush.msra.mxu0 %v230
    %621 = vmatpush.msra.mxu0 %v229
    %622 = vmatpush.msra.mxu0 %v228
    %623 = vmatmul.f32.gmra.mxu0 %v605
    %v624 = vpop.f32.mrf.mxu0
    %v625 = vadd.f32 0.0, %v624
    %626 = vdwg.mxu0
    %v628 = vrot.slane %v625, 6
    %v630 = vadd.f32 %v263, %v628
    %v631 = vxor.u32 %v630, 2147483648
    %v632 = vmul.f32 %v631, 1.442695
    %v633 = vpow.pop %v632
    %v634 = vadd.f32 %v633, 1.0
    %v635 = vrcp.pop %v634
    %v636 = vmul.f32 %v634, %v635
    %v637 = vsub.f32 1.0, %v636
    %v638 = vmul.f32 %v635, %v637
    %v639 = vadd.f32 %v635, %v638
    %vm640 = vweird.f32 %v634
    %vm641 = vweird.f32 %v635
    %vm642 = vmor %vm640, %vm641
    %v643 = vsel %vm642, %v635, %v639
    %v644 = vand.u32 2147483647, %v634
    %vm645 = vcmp.eq.f32.partialorder %v644, 8.507059e+37
    %v646 = vand.u32 %v634, 2147483648
    %v647 = vor.u32 1.1754944e-38, %v646
    %v648 = vsel %vm645, %v647, %v643
    %v649 = vmul.f32 1.0, %v648
    %v650 = vtanh.pop %v630
    %v652 = vrot.slane %v595, 6
    %v654 = vmul.f32 %v649, %v652
    %656 = vrot.lane.b32.xlu0 %v650, 64
    %v657 = vpop.permute.xlu0 %656
    %v659 = vmul.f32 %v649, %v657
    %661 = vrot.lane.b32.xlu0 %v659, 32
    %v662 = vpop.permute.xlu0 %661
    %v664 = vadd.f32 %v654, %v662
    %v665 = vtanh.pop %v664
    %667 = vrot.lane.b32.xlu0 %v665, 64
    %v668 = vpop.permute.xlu0 %667
    %v670 = vmul.f32 %v649, %v668
    %v672 = vrot.slane %v670, 2
    %673 = vrot.lane.b32.xlu0 %v672, 32
    %v674 = vpop.permute.xlu0 %673
    %v675 = vsel %vm168, %v674, 0
    %677 = vmatpush.msra.mxu0 0.0
    %678 = vmatpush.msra.mxu0 0.0
    %679 = vmatpush.msra.mxu0 0.0
    %680 = vmatpush.msra.mxu0 0.0
    %681 = vmatpush.msra.mxu0 0.0
    %682 = vmatpush.msra.mxu0 0.0
    %683 = vmatpush.msra.mxu0 0.0
    %684 = vmatpush.msra.mxu0 0.0
    %685 = vmatpush.msra.mxu0 0.0
    %686 = vmatpush.msra.mxu0 0.0
    %687 = vmatpush.msra.mxu0 0.0
    %688 = vmatpush.msra.mxu0 0.0
    %689 = vmatpush.msra.mxu0 %v231
    %690 = vmatpush.msra.mxu0 %v230
    %691 = vmatpush.msra.mxu0 %v229
    %692 = vmatpush.msra.mxu0 %v228
    %693 = vmatmul.f32.gmra.mxu0 %v675
    %v694 = vpop.f32.mrf.mxu0
    %v695 = vadd.f32 0.0, %v694
    %696 = vdwg.mxu0
    %v698 = vrot.slane %v695, 4
    %v700 = vadd.f32 %v263, %v698
    %v701 = vxor.u32 %v700, 2147483648
    %v702 = vmul.f32 %v701, 1.442695
    %v703 = vpow.pop %v702
    %v704 = vadd.f32 %v703, 1.0
    %v705 = vrcp.pop %v704
    %v706 = vmul.f32 %v704, %v705
    %v707 = vsub.f32 1.0, %v706
    %v708 = vmul.f32 %v705, %v707
    %v709 = vadd.f32 %v705, %v708
    %vm710 = vweird.f32 %v704
    %vm711 = vweird.f32 %v705
    %vm712 = vmor %vm710, %vm711
    %v713 = vsel %vm712, %v705, %v709
    %v714 = vand.u32 2147483647, %v704
    %vm715 = vcmp.eq.f32.partialorder %v714, 8.507059e+37
    %v716 = vand.u32 %v704, 2147483648
    %v717 = vor.u32 1.1754944e-38, %v716
    %v718 = vsel %vm715, %v717, %v713
    %v719 = vmul.f32 1.0, %v718
    %v720 = vtanh.pop %v700
    %v722 = vrot.slane %v664, 6
    %v724 = vmul.f32 %v719, %v722
    %726 = vrot.lane.b32.xlu0 %v720, 64
    %v727 = vpop.permute.xlu0 %726
    %v729 = vmul.f32 %v719, %v727
    %731 = vrot.lane.b32.xlu0 %v729, 32
    %v732 = vpop.permute.xlu0 %731
    %v734 = vadd.f32 %v724, %v732
    %v735 = vtanh.pop %v734
    %737 = vrot.lane.b32.xlu0 %v735, 64
    %v738 = vpop.permute.xlu0 %737
    %v740 = vmul.f32 %v719, %v738
    %v742 = vrot.slane %v740, 4
    %743 = vrot.lane.b32.xlu0 %v742, 32
    %v744 = vpop.permute.xlu0 %743
    %v745 = vsel %vm168, %v744, 0
    %747 = vmatpush.msra.mxu0 0.0
    %748 = vmatpush.msra.mxu0 0.0
    %749 = vmatpush.msra.mxu0 0.0
    %750 = vmatpush.msra.mxu0 0.0
    %751 = vmatpush.msra.mxu0 0.0
    %752 = vmatpush.msra.mxu0 0.0
    %753 = vmatpush.msra.mxu0 0.0
    %754 = vmatpush.msra.mxu0 0.0
    %755 = vmatpush.msra.mxu0 0.0
    %756 = vmatpush.msra.mxu0 0.0
    %757 = vmatpush.msra.mxu0 0.0
    %758 = vmatpush.msra.mxu0 0.0
    %759 = vmatpush.msra.mxu0 %v231
    %760 = vmatpush.msra.mxu0 %v230
    %761 = vmatpush.msra.mxu0 %v229
    %762 = vmatpush.msra.mxu0 %v228
    %763 = vmatmul.f32.gmra.mxu0 %v745
    %v764 = vpop.f32.mrf.mxu0
    %v765 = vadd.f32 0.0, %v764
    %766 = vdwg.mxu0
    %v768 = vrot.slane %v765, 2
    %v770 = vadd.f32 %v263, %v768
    %v771 = vxor.u32 %v770, 2147483648
    %v772 = vmul.f32 %v771, 1.442695
    %v773 = vpow.pop %v772
    %v774 = vadd.f32 %v773, 1.0
    %v775 = vrcp.pop %v774
    %v776 = vmul.f32 %v774, %v775
    %v777 = vsub.f32 1.0, %v776
    %v778 = vmul.f32 %v775, %v777
    %v779 = vadd.f32 %v775, %v778
    %vm780 = vweird.f32 %v774
    %vm781 = vweird.f32 %v775
    %vm782 = vmor %vm780, %vm781
    %v783 = vsel %vm782, %v775, %v779
    %v784 = vand.u32 2147483647, %v774
    %vm785 = vcmp.eq.f32.partialorder %v784, 8.507059e+37
    %v786 = vand.u32 %v774, 2147483648
    %v787 = vor.u32 1.1754944e-38, %v786
    %v788 = vsel %vm785, %v787, %v783
    %v789 = vmul.f32 1.0, %v788
    %v790 = vtanh.pop %v770
    %v792 = vrot.slane %v734, 6
    %v794 = vmul.f32 %v789, %v792
    %796 = vrot.lane.b32.xlu0 %v790, 64
    %v797 = vpop.permute.xlu0 %796
    %v799 = vmul.f32 %v789, %v797
    %801 = vrot.lane.b32.xlu0 %v799, 32
    %v802 = vpop.permute.xlu0 %801
    %v804 = vadd.f32 %v794, %v802
    %v805 = vtanh.pop %v804
    %807 = vrot.lane.b32.xlu0 %v805, 64
    %v808 = vpop.permute.xlu0 %807
    %v810 = vmul.f32 %v789, %v808
    %v811 = vsel %vm205, %v325, %v394
    %v812 = vsel %vm209, %v811, %v464
    %v813 = vsel %vm213, %v812, %v534
    %v814 = vsel %vm205, %v601, %v670
    %v815 = vsel %vm209, %v814, %v740
    %v816 = vsel %vm213, %v815, %v810
    %v817 = vld [vmem:[#allocation10] sm:$0xff]
    %v818 = vld [vmem:[#allocation10 + $0x8] sm:$0xff]
    %v819 = vld [vmem:[#allocation10 + $0x10] sm:$0xff]
    %v820 = vld [vmem:[#allocation10 + $0x18] sm:$0xff]
    %v821 = vld [vmem:[#allocation11] sm:$0xff]
    %v822 = vld [vmem:[#allocation11 + $0x8] sm:$0xff]
    %v823 = vld [vmem:[#allocation11 + $0x10] sm:$0xff]
    %v824 = vld [vmem:[#allocation11 + $0x18] sm:$0xff]
    %v825 = vld [vmem:[%s8] sm:$0x1]
    %v827 = vperm.slane %v825, 0
    %831 = vrot.lane.b32.xlu0 %v813, 32
    %v832 = vpop.permute.xlu0 %831
    %833 = vrot.lane.b32.xlu0 %v816, 32
    %v834 = vpop.permute.xlu0 %833
    %v835 = vsel %vm168, %v832, 0
    %v837 = vsel %vm168, %v834, 0
    %839 = vmatpush.msra.mxu0 0.0
    %840 = vmatpush.msra.mxu0 0.0
    %841 = vmatpush.msra.mxu0 0.0
    %842 = vmatpush.msra.mxu0 0.0
    %843 = vmatpush.msra.mxu0 0.0
    %844 = vmatpush.msra.mxu0 0.0
    %845 = vmatpush.msra.mxu0 0.0
    %846 = vmatpush.msra.mxu0 0.0
    %847 = vmatpush.msra.mxu0 0.0
    %848 = vmatpush.msra.mxu0 0.0
    %849 = vmatpush.msra.mxu0 0.0
    %850 = vmatpush.msra.mxu0 0.0
    %851 = vmatpush.msra.mxu0 %v820
    %852 = vmatpush.msra.mxu0 %v819
    %853 = vmatpush.msra.mxu0 %v818
    %854 = vmatpush.msra.mxu0 %v817
    %855 = vmatmul.f32.gmra.mxu0 %v835
    %v856 = vpop.f32.mrf.mxu0
    %v857 = vadd.f32 %v827, %v856
    %858 = vmatmul.f32.gmra.mxu0 %v837
    %v859 = vpop.f32.mrf.mxu0
    %v860 = vadd.f32 %v827, %v859
    %861 = vdwg.mxu0
    %862 = vmatpush.msra.mxu0 0.0
    %863 = vmatpush.msra.mxu0 0.0
    %864 = vmatpush.msra.mxu0 0.0
    %865 = vmatpush.msra.mxu0 0.0
    %866 = vmatpush.msra.mxu0 0.0
    %867 = vmatpush.msra.mxu0 0.0
    %868 = vmatpush.msra.mxu0 0.0
    %869 = vmatpush.msra.mxu0 0.0
    %870 = vmatpush.msra.mxu0 0.0
    %871 = vmatpush.msra.mxu0 0.0
    %872 = vmatpush.msra.mxu0 0.0
    %873 = vmatpush.msra.mxu0 0.0
    %874 = vmatpush.msra.mxu0 %v824
    %875 = vmatpush.msra.mxu0 %v823
    %876 = vmatpush.msra.mxu0 %v822
    %877 = vmatpush.msra.mxu0 %v821
    %878 = vmatmul.f32.gmra.mxu0 %v266
    %v879 = vpop.f32.mrf.mxu0
    %v880 = vadd.f32 0.0, %v879
    %881 = vdwg.mxu0
    %v882 = vadd.f32 %v857, %v880
    %v883 = vxor.u32 %v882, 2147483648
    %v884 = vmul.f32 %v883, 1.442695
    %v885 = vpow.pop %v884
    %v886 = vadd.f32 %v885, 1.0
    %v887 = vrcp.pop %v886
    %v888 = vmul.f32 %v886, %v887
    %v889 = vsub.f32 1.0, %v888
    %v890 = vmul.f32 %v887, %v889
    %v891 = vadd.f32 %v887, %v890
    %vm892 = vweird.f32 %v886
    %vm893 = vweird.f32 %v887
    %vm894 = vmor %vm892, %vm893
    %v895 = vsel %vm894, %v887, %v891
    %v896 = vand.u32 2147483647, %v886
    %vm897 = vcmp.eq.f32.partialorder %v896, 8.507059e+37
    %v898 = vand.u32 %v886, 2147483648
    %v899 = vor.u32 1.1754944e-38, %v898
    %v900 = vsel %vm897, %v899, %v895
    %v901 = vmul.f32 1.0, %v900
    %v902 = vtanh.pop %v882
    %v903 = vmul.f32 %v901, 0.0
    %905 = vrot.lane.b32.xlu0 %v902, 64
    %v906 = vpop.permute.xlu0 %905
    %v908 = vmul.f32 %v901, %v906
    %910 = vrot.lane.b32.xlu0 %v908, 32
    %v911 = vpop.permute.xlu0 %910
    %v913 = vadd.f32 %v903, %v911
    %v914 = vtanh.pop %v913
    %916 = vrot.lane.b32.xlu0 %v914, 64
    %v917 = vpop.permute.xlu0 %916
    %v919 = vmul.f32 %v901, %v917
    %921 = vrot.lane.b32.xlu0 %v919, 32
    %v922 = vpop.permute.xlu0 %921
    %v923 = vsel %vm168, %v922, 0
    %925 = vmatpush.msra.mxu0 0.0
    %926 = vmatpush.msra.mxu0 0.0
    %927 = vmatpush.msra.mxu0 0.0
    %928 = vmatpush.msra.mxu0 0.0
    %929 = vmatpush.msra.mxu0 0.0
    %930 = vmatpush.msra.mxu0 0.0
    %931 = vmatpush.msra.mxu0 0.0
    %932 = vmatpush.msra.mxu0 0.0
    %933 = vmatpush.msra.mxu0 0.0
    %934 = vmatpush.msra.mxu0 0.0
    %935 = vmatpush.msra.mxu0 0.0
    %936 = vmatpush.msra.mxu0 0.0
    %937 = vmatpush.msra.mxu0 %v824
    %938 = vmatpush.msra.mxu0 %v823
    %939 = vmatpush.msra.mxu0 %v822
    %940 = vmatpush.msra.mxu0 %v821
    %941 = vmatmul.f32.gmra.mxu0 %v923
    %v942 = vpop.f32.mrf.mxu0
    %v943 = vadd.f32 0.0, %v942
    %944 = vdwg.mxu0
    %v946 = vrot.slane %v943, 6
    %v948 = vadd.f32 %v857, %v946
    %v949 = vxor.u32 %v948, 2147483648
    %v950 = vmul.f32 %v949, 1.442695
    %v951 = vpow.pop %v950
    %v952 = vadd.f32 %v951, 1.0
    %v953 = vrcp.pop %v952
    %v954 = vmul.f32 %v952, %v953
    %v955 = vsub.f32 1.0, %v954
    %v956 = vmul.f32 %v953, %v955
    %v957 = vadd.f32 %v953, %v956
    %vm958 = vweird.f32 %v952
    %vm959 = vweird.f32 %v953
    %vm960 = vmor %vm958, %vm959
    %v961 = vsel %vm960, %v953, %v957
    %v962 = vand.u32 2147483647, %v952
    %vm963 = vcmp.eq.f32.partialorder %v962, 8.507059e+37
    %v964 = vand.u32 %v952, 2147483648
    %v965 = vor.u32 1.1754944e-38, %v964
    %v966 = vsel %vm963, %v965, %v961
    %v967 = vmul.f32 1.0, %v966
    %v968 = vtanh.pop %v948
    %v970 = vrot.slane %v913, 6
    %v972 = vmul.f32 %v967, %v970
    %974 = vrot.lane.b32.xlu0 %v968, 64
    %v975 = vpop.permute.xlu0 %974
    %v977 = vmul.f32 %v967, %v975
    %979 = vrot.lane.b32.xlu0 %v977, 32
    %v980 = vpop.permute.xlu0 %979
    %v982 = vadd.f32 %v972, %v980
    %v983 = vtanh.pop %v982
    %985 = vrot.lane.b32.xlu0 %v983, 64
    %v986 = vpop.permute.xlu0 %985
    %v988 = vmul.f32 %v967, %v986
    %v990 = vrot.slane %v988, 2
    %991 = vrot.lane.b32.xlu0 %v990, 32
    %v992 = vpop.permute.xlu0 %991
    %v993 = vsel %vm168, %v992, 0
    %995 = vmatpush.msra.mxu0 0.0
    %996 = vmatpush.msra.mxu0 0.0
    %997 = vmatpush.msra.mxu0 0.0
    %998 = vmatpush.msra.mxu0 0.0
    %999 = vmatpush.msra.mxu0 0.0
    %1000 = vmatpush.msra.mxu0 0.0
    %1001 = vmatpush.msra.mxu0 0.0
    %1002 = vmatpush.msra.mxu0 0.0
    %1003 = vmatpush.msra.mxu0 0.0
    %1004 = vmatpush.msra.mxu0 0.0
    %1005 = vmatpush.msra.mxu0 0.0
    %1006 = vmatpush.msra.mxu0 0.0
    %1007 = vmatpush.msra.mxu0 %v824
    %1008 = vmatpush.msra.mxu0 %v823
    %1009 = vmatpush.msra.mxu0 %v822
    %1010 = vmatpush.msra.mxu0 %v821
    %1011 = vmatmul.f32.gmra.mxu0 %v993
    %v1012 = vpop.f32.mrf.mxu0
    %v1013 = vadd.f32 0.0, %v1012
    %1014 = vdwg.mxu0
    %v1016 = vrot.slane %v1013, 4
    %v1018 = vadd.f32 %v857, %v1016
    %v1019 = vxor.u32 %v1018, 2147483648
    %v1020 = vmul.f32 %v1019, 1.442695
    %v1021 = vpow.pop %v1020
    %v1022 = vadd.f32 %v1021, 1.0
    %v1023 = vrcp.pop %v1022
    %v1024 = vmul.f32 %v1022, %v1023
    %v1025 = vsub.f32 1.0, %v1024
    %v1026 = vmul.f32 %v1023, %v1025
    %v1027 = vadd.f32 %v1023, %v1026
    %vm1028 = vweird.f32 %v1022
    %vm1029 = vweird.f32 %v1023
    %vm1030 = vmor %vm1028, %vm1029
    %v1031 = vsel %vm1030, %v1023, %v1027
    %v1032 = vand.u32 2147483647, %v1022
    %vm1033 = vcmp.eq.f32.partialorder %v1032, 8.507059e+37
    %v1034 = vand.u32 %v1022, 2147483648
    %v1035 = vor.u32 1.1754944e-38, %v1034
    %v1036 = vsel %vm1033, %v1035, %v1031
    %v1037 = vmul.f32 1.0, %v1036
    %v1038 = vtanh.pop %v1018
    %v1040 = vrot.slane %v982, 6
    %v1042 = vmul.f32 %v1037, %v1040
    %1044 = vrot.lane.b32.xlu0 %v1038, 64
    %v1045 = vpop.permute.xlu0 %1044
    %v1047 = vmul.f32 %v1037, %v1045
    %1049 = vrot.lane.b32.xlu0 %v1047, 32
    %v1050 = vpop.permute.xlu0 %1049
    %v1052 = vadd.f32 %v1042, %v1050
    %v1053 = vtanh.pop %v1052
    %1055 = vrot.lane.b32.xlu0 %v1053, 64
    %v1056 = vpop.permute.xlu0 %1055
    %v1058 = vmul.f32 %v1037, %v1056
    %v1060 = vrot.slane %v1058, 4
    %1061 = vrot.lane.b32.xlu0 %v1060, 32
    %v1062 = vpop.permute.xlu0 %1061
    %v1063 = vsel %vm168, %v1062, 0
    %1065 = vmatpush.msra.mxu0 0.0
    %1066 = vmatpush.msra.mxu0 0.0
    %1067 = vmatpush.msra.mxu0 0.0
    %1068 = vmatpush.msra.mxu0 0.0
    %1069 = vmatpush.msra.mxu0 0.0
    %1070 = vmatpush.msra.mxu0 0.0
    %1071 = vmatpush.msra.mxu0 0.0
    %1072 = vmatpush.msra.mxu0 0.0
    %1073 = vmatpush.msra.mxu0 0.0
    %1074 = vmatpush.msra.mxu0 0.0
    %1075 = vmatpush.msra.mxu0 0.0
    %1076 = vmatpush.msra.mxu0 0.0
    %1077 = vmatpush.msra.mxu0 %v824
    %1078 = vmatpush.msra.mxu0 %v823
    %1079 = vmatpush.msra.mxu0 %v822
    %1080 = vmatpush.msra.mxu0 %v821
    %1081 = vmatmul.f32.gmra.mxu0 %v1063
    %v1082 = vpop.f32.mrf.mxu0
    %v1083 = vadd.f32 0.0, %v1082
    %1084 = vdwg.mxu0
    %v1086 = vrot.slane %v1083, 2
    %v1088 = vadd.f32 %v857, %v1086
    %v1089 = vxor.u32 %v1088, 2147483648
    %v1090 = vmul.f32 %v1089, 1.442695
    %v1091 = vpow.pop %v1090
    %v1092 = vadd.f32 %v1091, 1.0
    %v1093 = vrcp.pop %v1092
    %v1094 = vmul.f32 %v1092, %v1093
    %v1095 = vsub.f32 1.0, %v1094
    %v1096 = vmul.f32 %v1093, %v1095
    %v1097 = vadd.f32 %v1093, %v1096
    %vm1098 = vweird.f32 %v1092
    %vm1099 = vweird.f32 %v1093
    %vm1100 = vmor %vm1098, %vm1099
    %v1101 = vsel %vm1100, %v1093, %v1097
    %v1102 = vand.u32 2147483647, %v1092
    %vm1103 = vcmp.eq.f32.partialorder %v1102, 8.507059e+37
    %v1104 = vand.u32 %v1092, 2147483648
    %v1105 = vor.u32 1.1754944e-38, %v1104
    %v1106 = vsel %vm1103, %v1105, %v1101
    %v1107 = vmul.f32 1.0, %v1106
    %v1108 = vtanh.pop %v1088
    %v1110 = vrot.slane %v1052, 6
    %v1112 = vmul.f32 %v1107, %v1110
    %1114 = vrot.lane.b32.xlu0 %v1108, 64
    %v1115 = vpop.permute.xlu0 %1114
    %v1117 = vmul.f32 %v1107, %v1115
    %1119 = vrot.lane.b32.xlu0 %v1117, 32
    %v1120 = vpop.permute.xlu0 %1119
    %v1122 = vadd.f32 %v1112, %v1120
    %v1123 = vtanh.pop %v1122
    %1125 = vrot.lane.b32.xlu0 %v1123, 64
    %v1126 = vpop.permute.xlu0 %1125
    %v1128 = vmul.f32 %v1107, %v1126
    %v1130 = vrot.slane %v1128, 6
    %1131 = vrot.lane.b32.xlu0 %v1130, 32
    %v1132 = vpop.permute.xlu0 %1131
    %v1133 = vsel %vm168, %v1132, 0
    %1135 = vmatpush.msra.mxu0 0.0
    %1136 = vmatpush.msra.mxu0 0.0
    %1137 = vmatpush.msra.mxu0 0.0
    %1138 = vmatpush.msra.mxu0 0.0
    %1139 = vmatpush.msra.mxu0 0.0
    %1140 = vmatpush.msra.mxu0 0.0
    %1141 = vmatpush.msra.mxu0 0.0
    %1142 = vmatpush.msra.mxu0 0.0
    %1143 = vmatpush.msra.mxu0 0.0
    %1144 = vmatpush.msra.mxu0 0.0
    %1145 = vmatpush.msra.mxu0 0.0
    %1146 = vmatpush.msra.mxu0 0.0
    %1147 = vmatpush.msra.mxu0 %v824
    %1148 = vmatpush.msra.mxu0 %v823
    %1149 = vmatpush.msra.mxu0 %v822
    %1150 = vmatpush.msra.mxu0 %v821
    %1151 = vmatmul.f32.gmra.mxu0 %v1133
    %v1152 = vpop.f32.mrf.mxu0
    %v1153 = vadd.f32 0.0, %v1152
    %1154 = vdwg.mxu0
    %v1155 = vadd.f32 %v860, %v1153
    %v1156 = vxor.u32 %v1155, 2147483648
    %v1157 = vmul.f32 %v1156, 1.442695
    %v1158 = vpow.pop %v1157
    %v1159 = vadd.f32 %v1158, 1.0
    %v1160 = vrcp.pop %v1159
    %v1161 = vmul.f32 %v1159, %v1160
    %v1162 = vsub.f32 1.0, %v1161
    %v1163 = vmul.f32 %v1160, %v1162
    %v1164 = vadd.f32 %v1160, %v1163
    %vm1165 = vweird.f32 %v1159
    %vm1166 = vweird.f32 %v1160
    %vm1167 = vmor %vm1165, %vm1166
    %v1168 = vsel %vm1167, %v1160, %v1164
    %v1169 = vand.u32 2147483647, %v1159
    %vm1170 = vcmp.eq.f32.partialorder %v1169, 8.507059e+37
    %v1171 = vand.u32 %v1159, 2147483648
    %v1172 = vor.u32 1.1754944e-38, %v1171
    %v1173 = vsel %vm1170, %v1172, %v1168
    %v1174 = vmul.f32 1.0, %v1173
    %v1175 = vtanh.pop %v1155
    %v1177 = vrot.slane %v1122, 6
    %v1179 = vmul.f32 %v1174, %v1177
    %1181 = vrot.lane.b32.xlu0 %v1175, 64
    %v1182 = vpop.permute.xlu0 %1181
    %v1184 = vmul.f32 %v1174, %v1182
    %1186 = vrot.lane.b32.xlu0 %v1184, 32
    %v1187 = vpop.permute.xlu0 %1186
    %v1189 = vadd.f32 %v1179, %v1187
    %v1190 = vtanh.pop %v1189
    %1192 = vrot.lane.b32.xlu0 %v1190, 64
    %v1193 = vpop.permute.xlu0 %1192
    %v1195 = vmul.f32 %v1174, %v1193
    %1197 = vrot.lane.b32.xlu0 %v1195, 32
    %v1198 = vpop.permute.xlu0 %1197
    %v1199 = vsel %vm168, %v1198, 0
    %1201 = vmatpush.msra.mxu0 0.0
    %1202 = vmatpush.msra.mxu0 0.0
    %1203 = vmatpush.msra.mxu0 0.0
    %1204 = vmatpush.msra.mxu0 0.0
    %1205 = vmatpush.msra.mxu0 0.0
    %1206 = vmatpush.msra.mxu0 0.0
    %1207 = vmatpush.msra.mxu0 0.0
    %1208 = vmatpush.msra.mxu0 0.0
    %1209 = vmatpush.msra.mxu0 0.0
    %1210 = vmatpush.msra.mxu0 0.0
    %1211 = vmatpush.msra.mxu0 0.0
    %1212 = vmatpush.msra.mxu0 0.0
    %1213 = vmatpush.msra.mxu0 %v824
    %1214 = vmatpush.msra.mxu0 %v823
    %1215 = vmatpush.msra.mxu0 %v822
    %1216 = vmatpush.msra.mxu0 %v821
    %1217 = vmatmul.f32.gmra.mxu0 %v1199
    %v1218 = vpop.f32.mrf.mxu0
    %v1219 = vadd.f32 0.0, %v1218
    %1220 = vdwg.mxu0
    %v1222 = vrot.slane %v1219, 6
    %v1224 = vadd.f32 %v860, %v1222
    %v1225 = vxor.u32 %v1224, 2147483648
    %v1226 = vmul.f32 %v1225, 1.442695
    %v1227 = vpow.pop %v1226
    %v1228 = vadd.f32 %v1227, 1.0
    %v1229 = vrcp.pop %v1228
    %v1230 = vmul.f32 %v1228, %v1229
    %v1231 = vsub.f32 1.0, %v1230
    %v1232 = vmul.f32 %v1229, %v1231
    %v1233 = vadd.f32 %v1229, %v1232
    %vm1234 = vweird.f32 %v1228
    %vm1235 = vweird.f32 %v1229
    %vm1236 = vmor %vm1234, %vm1235
    %v1237 = vsel %vm1236, %v1229, %v1233
    %v1238 = vand.u32 2147483647, %v1228
    %vm1239 = vcmp.eq.f32.partialorder %v1238, 8.507059e+37
    %v1240 = vand.u32 %v1228, 2147483648
    %v1241 = vor.u32 1.1754944e-38, %v1240
    %v1242 = vsel %vm1239, %v1241, %v1237
    %v1243 = vmul.f32 1.0, %v1242
    %v1244 = vtanh.pop %v1224
    %v1246 = vrot.slane %v1189, 6
    %v1248 = vmul.f32 %v1243, %v1246
    %1250 = vrot.lane.b32.xlu0 %v1244, 64
    %v1251 = vpop.permute.xlu0 %1250
    %v1253 = vmul.f32 %v1243, %v1251
    %1255 = vrot.lane.b32.xlu0 %v1253, 32
    %v1256 = vpop.permute.xlu0 %1255
    %v1258 = vadd.f32 %v1248, %v1256
    %v1259 = vtanh.pop %v1258
    %1261 = vrot.lane.b32.xlu0 %v1259, 64
    %v1262 = vpop.permute.xlu0 %1261
    %v1264 = vmul.f32 %v1243, %v1262
    %v1266 = vrot.slane %v1264, 2
    %1267 = vrot.lane.b32.xlu0 %v1266, 32
    %v1268 = vpop.permute.xlu0 %1267
    %v1269 = vsel %vm168, %v1268, 0
    %1271 = vmatpush.msra.mxu0 0.0
    %1272 = vmatpush.msra.mxu0 0.0
    %1273 = vmatpush.msra.mxu0 0.0
    %1274 = vmatpush.msra.mxu0 0.0
    %1275 = vmatpush.msra.mxu0 0.0
    %1276 = vmatpush.msra.mxu0 0.0
    %1277 = vmatpush.msra.mxu0 0.0
    %1278 = vmatpush.msra.mxu0 0.0
    %1279 = vmatpush.msra.mxu0 0.0
    %1280 = vmatpush.msra.mxu0 0.0
    %1281 = vmatpush.msra.mxu0 0.0
    %1282 = vmatpush.msra.mxu0 0.0
    %1283 = vmatpush.msra.mxu0 %v824
    %1284 = vmatpush.msra.mxu0 %v823
    %1285 = vmatpush.msra.mxu0 %v822
    %1286 = vmatpush.msra.mxu0 %v821
    %1287 = vmatmul.f32.gmra.mxu0 %v1269
    %v1288 = vpop.f32.mrf.mxu0
    %v1289 = vadd.f32 0.0, %v1288
    %1290 = vdwg.mxu0
    %v1292 = vrot.slane %v1289, 4
    %v1294 = vadd.f32 %v860, %v1292
    %v1295 = vxor.u32 %v1294, 2147483648
    %v1296 = vmul.f32 %v1295, 1.442695
    %v1297 = vpow.pop %v1296
    %v1298 = vadd.f32 %v1297, 1.0
    %v1299 = vrcp.pop %v1298
    %v1300 = vmul.f32 %v1298, %v1299
    %v1301 = vsub.f32 1.0, %v1300
    %v1302 = vmul.f32 %v1299, %v1301
    %v1303 = vadd.f32 %v1299, %v1302
    %vm1304 = vweird.f32 %v1298
    %vm1305 = vweird.f32 %v1299
    %vm1306 = vmor %vm1304, %vm1305
    %v1307 = vsel %vm1306, %v1299, %v1303
    %v1308 = vand.u32 2147483647, %v1298
    %vm1309 = vcmp.eq.f32.partialorder %v1308, 8.507059e+37
    %v1310 = vand.u32 %v1298, 2147483648
    %v1311 = vor.u32 1.1754944e-38, %v1310
    %v1312 = vsel %vm1309, %v1311, %v1307
    %v1313 = vmul.f32 1.0, %v1312
    %v1314 = vtanh.pop %v1294
    %v1316 = vrot.slane %v1258, 6
    %v1318 = vmul.f32 %v1313, %v1316
    %1320 = vrot.lane.b32.xlu0 %v1314, 64
    %v1321 = vpop.permute.xlu0 %1320
    %v1323 = vmul.f32 %v1313, %v1321
    %1325 = vrot.lane.b32.xlu0 %v1323, 32
    %v1326 = vpop.permute.xlu0 %1325
    %v1328 = vadd.f32 %v1318, %v1326
    %v1329 = vtanh.pop %v1328
    %1331 = vrot.lane.b32.xlu0 %v1329, 64
    %v1332 = vpop.permute.xlu0 %1331
    %v1334 = vmul.f32 %v1313, %v1332
    %v1336 = vrot.slane %v1334, 4
    %1337 = vrot.lane.b32.xlu0 %v1336, 32
    %v1338 = vpop.permute.xlu0 %1337
    %v1339 = vsel %vm168, %v1338, 0
    %1341 = vmatpush.msra.mxu0 0.0
    %1342 = vmatpush.msra.mxu0 0.0
    %1343 = vmatpush.msra.mxu0 0.0
    %1344 = vmatpush.msra.mxu0 0.0
    %1345 = vmatpush.msra.mxu0 0.0
    %1346 = vmatpush.msra.mxu0 0.0
    %1347 = vmatpush.msra.mxu0 0.0
    %1348 = vmatpush.msra.mxu0 0.0
    %1349 = vmatpush.msra.mxu0 0.0
    %1350 = vmatpush.msra.mxu0 0.0
    %1351 = vmatpush.msra.mxu0 0.0
    %1352 = vmatpush.msra.mxu0 0.0
    %1353 = vmatpush.msra.mxu0 %v824
    %1354 = vmatpush.msra.mxu0 %v823
    %1355 = vmatpush.msra.mxu0 %v822
    %1356 = vmatpush.msra.mxu0 %v821
    %1357 = vmatmul.f32.gmra.mxu0 %v1339
    %v1358 = vpop.f32.mrf.mxu0
    %v1359 = vadd.f32 0.0, %v1358
    %1360 = vdwg.mxu0
    %v1362 = vrot.slane %v1359, 2
    %v1364 = vadd.f32 %v860, %v1362
    %v1365 = vxor.u32 %v1364, 2147483648
    %v1366 = vmul.f32 %v1365, 1.442695
    %v1367 = vpow.pop %v1366
    %v1368 = vadd.f32 %v1367, 1.0
    %v1369 = vrcp.pop %v1368
    %v1370 = vmul.f32 %v1368, %v1369
    %v1371 = vsub.f32 1.0, %v1370
    %v1372 = vmul.f32 %v1369, %v1371
    %v1373 = vadd.f32 %v1369, %v1372
    %vm1374 = vweird.f32 %v1368
    %vm1375 = vweird.f32 %v1369
    %vm1376 = vmor %vm1374, %vm1375
    %v1377 = vsel %vm1376, %v1369, %v1373
    %v1378 = vand.u32 2147483647, %v1368
    %vm1379 = vcmp.eq.f32.partialorder %v1378, 8.507059e+37
    %v1380 = vand.u32 %v1368, 2147483648
    %v1381 = vor.u32 1.1754944e-38, %v1380
    %v1382 = vsel %vm1379, %v1381, %v1377
    %v1383 = vmul.f32 1.0, %v1382
    %v1384 = vtanh.pop %v1364
    %v1386 = vrot.slane %v1328, 6
    %v1388 = vmul.f32 %v1383, %v1386
    %1390 = vrot.lane.b32.xlu0 %v1384, 64
    %v1391 = vpop.permute.xlu0 %1390
    %v1393 = vmul.f32 %v1383, %v1391
    %1395 = vrot.lane.b32.xlu0 %v1393, 32
    %v1396 = vpop.permute.xlu0 %1395
    %v1398 = vadd.f32 %v1388, %v1396
    %v1399 = vtanh.pop %v1398
    %1401 = vrot.lane.b32.xlu0 %v1399, 64
    %v1402 = vpop.permute.xlu0 %1401
    %v1404 = vmul.f32 %v1383, %v1402
    %1406 = vrot.lane.b32.xlu0 %v990, 64
    %v1407 = vpop.permute.xlu0 %1406
    %1409 = vrot.lane.b32.xlu0 %v1060, 96
    %v1410 = vpop.permute.xlu0 %1409
    %1414 = vrot.lane.b32.xlu0 %v1266, 64
    %v1415 = vpop.permute.xlu0 %1414
    %1417 = vrot.lane.b32.xlu0 %v1336, 96
    %v1418 = vpop.permute.xlu0 %1417
    %v1421 = vrot.slane %v1404, 6
    %v1423 = vsel %vm168, %v922, %v1407
    %vm1424 = vcmask 523264
    %v1425 = vsel %vm1424, %v1423, %v1410
    %vm1426 = vcmask 785408
    %v1427 = vsel %vm1426, %v1425, %v1130
    %v1428 = vsel %vm168, %v1198, %v1415
    %v1429 = vsel %vm1424, %v1428, %v1418
    %v1430 = vsel %vm1426, %v1429, %v1421
    %v1433 = vrot.slane %v1430, 6
    %v1434 = vsel %vm205, %v1427, %v1433
    %1436 = vst [vmem:[#allocation14] sm:$0xf] %v1434
    // Predicated region
    $region62: #{tpu_custom_call.1} parent=1 // pred_check
      _
    $region63: #{tpu_custom_call.1} parent=1 // pred_check_branch
      %1438 = sbr.rel (0) target = $region65
    $region64: #{tpu_custom_call.1} parent=1 // pred_region
      %1440 = vsyncadd [#allocation4], 0
      %s1441 = sshll.u32 [#allocation13], 4
      %s1442 = int_to_ptr.vmem [resolvable:$true] %s1441
      %s1443 = sshll.u32 %s9, 4
      %s1444 = int_to_ptr.hbm [resolvable:$true] %s1443
      %1449 = dma.vmem_to_hbm [thread:$0]  %s1442, 256, %s1444, [#allocation4], 128, 128, 8
    $region65: #{tpu_custom_call.1} parent=1 // pred_fallthru
      _
    // Predicated region
    $region66: #{tpu_custom_call.1} parent=1 // pred_check
      _
    $region67: #{tpu_custom_call.1} parent=1 // pred_check_branch
      %1451 = sbr.rel (0) target = $region69
    $region68: #{tpu_custom_call.1} parent=1 // pred_region
      %1453 = vsyncadd [#allocation15], 0
      %s1455 = sshll.u32 [#allocation14], 4
      %s1456 = int_to_ptr.vmem [resolvable:$true] %s1455
      %s1457 = sshll.u32 %s10, 4
      %s1458 = int_to_ptr.hbm [resolvable:$true] %s1457
      %1460 = dma.vmem_to_hbm [thread:$0]  %s1456, 64, %s1458, [#allocation15]
    $region69: #{tpu_custom_call.1} parent=1 // pred_fallthru
      _
    // Predicated region
    $region70: #{tpu_custom_call.1} parent=1 // pred_check
      _
    $region71: #{tpu_custom_call.1} parent=1 // pred_check_branch
      %1462 = sbr.rel (0) target = $region73
    $region72: #{tpu_custom_call.1} parent=1 // pred_region
      %1464 = dma.done [#allocation4], 256
    $region73: #{tpu_custom_call.1} parent=1 // pred_fallthru
      _
    // Predicated region
    $region74: #{tpu_custom_call.1} parent=1 // pred_check
      _
    $region75: #{tpu_custom_call.1} parent=1 // pred_check_branch
      %1466 = sbr.rel (0) target = $region77
    $region76: #{tpu_custom_call.1} parent=1 // pred_region
      %1468 = dma.done [#allocation15], 64
    $region77: #{tpu_custom_call.1} parent=1 // pred_fallthru
      _
    %1469 = vsyncpa [#allocation3], 1
    %1470 = vsyncpa [#allocation6], 1
    %1471 = vsyncpa [#allocation9], 1
    %1472 = vsyncpa [#allocation12], 1
    %1473 = vsyncpa [#allocation4], 1
    %1474 = vsyncpa [#allocation15], 1

</llo_original>
